<compile_context>
chip_gen: v7x
topology: tpu7x:2x2x1
jax: 0.10.0
libtpu: 0.0.40
codegen_flags: <defaults>
</compile_context>

<pallas_src>
import numpy as np
import jax
import jax.numpy as jnp
from jax.experimental import pallas as pl
from jax.experimental.pallas import tpu as pltpu

# Finite "minus infinity": relu(x + _BIG_NEG) == 0 for any finite x, and
# 0 * _BIG_NEG == 0 (a true -inf would create NaNs in the matmul).
_BIG_NEG = -1e30


def _make_kernel(channels):
    C = channels

    def kernel(x_ref, w1_ref, w2_ref, fc_ref, pool_ref, out_ref):
        # conv1 for the three kernel taps (+ bias + conv-edge zeroing): one MXU matmul.
        h3 = jnp.maximum(
            jnp.dot(w1_ref[...], x_ref[...], preferred_element_type=jnp.float32), 0.0)
        # conv2 (+ bias via the constant-one row of h3): one MXU matmul.
        h2 = jnp.maximum(
            jnp.dot(w2_ref[...], h3, preferred_element_type=jnp.float32), 0.0)
        # AdaptiveAvgPool1d(1): masked mean over the valid lanes of every sequence block.
        pooled = jnp.dot(h2, pool_ref[...], preferred_element_type=jnp.float32)   # (C, 128)
        # Linear(C -> 3) (rows 3..7 of fc are zero padding); lane-dense (8,128) store.
        fc = fc_ref[...]
        out_ref[0] = (
            jnp.dot(fc[:, :C], pooled, preferred_element_type=jnp.float32) + fc[:, C:])

    return kernel


def prepare_params(params, *, seq_len, block_batch=16):
    """One-time packing of the module parameters into matmul-ready operands.

    X8 (built per call by the wrapper) has rows, per 128-lane sequence block:
      0: x[l-2]  1: x[l-1]  2: x[l]  3: x[l+1]  4: x[l+2]   (zero padded)
      5: 1.0 (bias carrier)  6: [l == 0]  7: [l == L-1]     (edge indicators)

    W1a  (3C+8, 8): rows 0:C   -> h1[l-1]  (taps on cols 0..2, -1e30 on col 6)
                    rows C:2C  -> h1[l]    (taps on cols 1..3)
                    rows 2C:3C -> h1[l+1]  (taps on cols 2..4, -1e30 on col 7)
                    row  3C    -> constant 1 (carries conv2's bias), rest zero
    W2a  (C, 3C+8): [w2[:,:,0] | w2[:,:,1] | w2[:,:,2] | b2 | 0...]
    FC   (8, C+1) : rows 0..2 = fc weight, col C = fc bias
    POOL (Bt*128, 128): column j averages the L valid lanes of sequence block j.
    """
    w1, b1, w2, b2, fcw, fcb = (np.asarray(p, np.float32) for p in params)
    C, _, K = w1.shape
    L = int(seq_len)
    Bt = int(block_batch)
    if K != 3 or w2.shape != (C, C, 3) or fcw.shape != (3, C):
        raise ValueError("only kernel_size=3, num_layers=2, fc(C->3) is implemented")
    if not (1 <= L <= 128):
        # TODO(synk): seq_len > 128 needs real halo exchange between lane blocks.
        raise ValueError("seq_len must be in [1, 128]")

    w1k = w1[:, 0, :]                                        # (C, 3)
    w1a = np.zeros((3 * C + 8, 8), np.float32)
    w1a[0:C,       0:3] = w1k                                # band r: h1[l-1]
    w1a[C:2 * C,   1:4] = w1k                                # band c: h1[l]
    w1a[2 * C:3 * C, 2:5] = w1k                              # band l: h1[l+1]
    w1a[0:3 * C, 5] = np.tile(b1, 3)                         # conv1 bias
    w1a[0:C, 6] = _BIG_NEG                                   # zero band r at l == 0
    w1a[2 * C:3 * C, 7] = _BIG_NEG                           # zero band l at l == L-1
    w1a[3 * C, 5] = 1.0                                      # constant-one output row

    w2a = np.zeros((C, 3 * C + 8), np.float32)
    w2a[:, 0:C] = w2[:, :, 0]
    w2a[:, C:2 * C] = w2[:, :, 1]
    w2a[:, 2 * C:3 * C] = w2[:, :, 2]
    w2a[:, 3 * C] = b2                                       # conv2 bias

    fca = np.zeros((8, C + 1), np.float32)
    fca[:3, :C] = fcw
    fca[:3, C] = fcb

    pool = np.zeros((Bt * 128, 128), np.float32)
    for j in range(Bt):
        pool[j * 128:j * 128 + L, j] = 1.0 / L

    return dict(w1a=jnp.asarray(w1a), w2a=jnp.asarray(w2a), fca=jnp.asarray(fca),
                pool=jnp.asarray(pool), channels=C, seq_len=L, block_batch=Bt)


def make_forward(prep):
    """Returns a jitted (B, L) -> (B, 3) forward using the prepared operands."""
    C = prep["channels"]
    L = prep["seq_len"]
    Bt = prep["block_batch"]
    w1a, w2a, fca, pool = prep["w1a"], prep["w2a"], prep["fca"], prep["pool"]
    kernel = _make_kernel(C)
    N = Bt * 128                                             # lanes per grid step

    @jax.jit
    def fwd(x):
        if x.shape[1] != L:
            raise ValueError(f"expected seq_len={L}, got {x.shape[1]}")
        B = x.shape[0]
        nsteps = pl.cdiv(B, Bt)
        Bp = nsteps * Bt

        # ---- pack the batch: one 128-lane block per sequence (plain XLA ops) ----
        xz = jnp.pad(x.astype(jnp.float32), ((0, Bp - B), (0, 0)))     # (Bp, L)
        xe = jnp.pad(xz, ((0, 0), (2, 130 - L)))                       # xe[:, j] = x[:, j-2]
        shifted = [xe[:, k:k + 128] for k in range(5)]                 # x[l+k-2], k = 0..4
        lane = jnp.arange(128)
        aux = jnp.stack([jnp.ones((128,), jnp.float32),
                         (lane == 0).astype(jnp.float32),
                         (lane == L - 1).astype(jnp.float32)])         # (3, 128)
        x8 = jnp.concatenate(
            [jnp.stack(shifted, axis=0),                               # (5, Bp, 128)
             jnp.broadcast_to(aux[:, None, :], (3, Bp, 128))], axis=0
        ).reshape(8, Bp * 128)

        out = pl.pallas_call(
            kernel,
            out_shape=jax.ShapeDtypeStruct((nsteps, 8, 128), jnp.float32),
            grid=(nsteps,),
            in_specs=[
                pl.BlockSpec((8, N), lambda i: (0, i)),                # streamed per step
                pl.BlockSpec((3 * C + 8, 8), lambda i: (0, 0)),        # resident
                pl.BlockSpec((C, 3 * C + 8), lambda i: (0, 0)),        # resident
                pl.BlockSpec((8, C + 1), lambda i: (0, 0)),            # resident
                pl.BlockSpec((N, 128), lambda i: (0, 0)),              # resident
            ],
            out_specs=pl.BlockSpec((1, 8, 128), lambda i: (i, 0, 0)),
            compiler_params=pltpu.CompilerParams(
                dimension_semantics=("parallel",)),                    # v7x megacore
        )(x8, w1a, w2a, fca, pool)

        res = jnp.transpose(out[:, :3, :Bt], (0, 2, 1)).reshape(Bp, 3)
        return res[:B]

    return fwd


def forward_single(t, fwd_batched):
    """Module-equivalent entry point: t of shape (seq_len, 1) -> (3,)."""
    t = jnp.asarray(t, jnp.float32)
    return fwd_batched(t[:, 0][None, :])[0]


def init_params(key, channels=16, kernel_size=3):
    """Deterministic synthetic init matching the PyTorch module's shapes."""
    k = jax.random.split(key, 6)
    w1 = jax.random.normal(k[0], (channels, 1, kernel_size), jnp.float32) * 0.3
    b1 = jax.random.normal(k[1], (channels,), jnp.float32) * 0.1
    w2 = jax.random.normal(k[2], (channels, channels, kernel_size), jnp.float32) * 0.1
    b2 = jax.random.normal(k[3], (channels,), jnp.float32) * 0.1
    fcw = jax.random.normal(k[4], (3, channels), jnp.float32) * 0.2
    fcb = jax.random.normal(k[5], (3,), jnp.float32) * 0.1
    return (w1, b1, w2, b2, fcw, fcb)


def reference_forward(x_seq, params):
    """Pure-numpy (float64) forward of CNNLPPLSNet for one sequence of shape (L,)."""
    w1, b1, w2, b2, fcw, fcb = (np.asarray(p, np.float64) for p in params)
    x = np.asarray(x_seq, np.float64)
    L = x.shape[0]
    xp = np.pad(x, (1, 1))
    X3 = np.stack([xp[k:k + L] for k in range(3)])            # X3[k, l] = x[l+k-1]
    h1 = np.maximum(w1[:, 0, :] @ X3 + b1[:, None], 0.0)      # (C, L)
    h1p = np.pad(h1, ((0, 0), (1, 1)))
    z2 = b2[:, None] + sum(w2[:, :, k] @ h1p[:, k:k + L] for k in range(3))
    h2 = np.maximum(z2, 0.0)
    pooled = h2.mean(axis=1)
    return fcw @ pooled + fcb                                 # (3,)


if __name__ == "__main__":
    key = jax.random.PRNGKey(0)
    kp, kx = jax.random.split(key)

    channels, kernel_size, seq_len = 16, 3, 8        # small demo shapes
    batch, block_batch = 24, 16                      # 16 sequences (2048 lanes) per grid step

    params = init_params(kp, channels=channels, kernel_size=kernel_size)
    prep = prepare_params(params, seq_len=seq_len, block_batch=block_batch)
    fwd = make_forward(prep)

    x = jax.random.normal(kx, (batch, seq_len), jnp.float32)  # 24 independent sequences
    out = jax.block_until_ready(fwd(x))                        # (batch, 3)

    ref = np.stack([reference_forward(np.asarray(x[b]), params) for b in range(batch)])
    np.testing.assert_allclose(np.asarray(out), ref, rtol=2e-3, atol=2e-3)

    print("KERNEL_OK")
</pallas_src>

<mosaic_0001>
module attributes {stable_mosaic.version = 11 : i64} {
  func.func @kernel(%arg0: i32, %arg1: memref<8x2048xf32, #tpu.memory_space<vmem>>, %arg2: memref<56x8xf32, #tpu.memory_space<vmem>>, %arg3: memref<16x56xf32, #tpu.memory_space<vmem>>, %arg4: memref<8x17xf32, #tpu.memory_space<vmem>>, %arg5: memref<2048x128xf32, #tpu.memory_space<vmem>>, %arg6: memref<1x8x128xf32, #tpu.memory_space<vmem>>) attributes {dimension_semantics = [#tpu.dimension_semantics<parallel>], iteration_bounds = array<i64: 2>, scalar_prefetch = 0 : i64, scratch_operands = 0 : i64, tpu.core_type = #tpu.core_type<tc>, window_params = [{transform_indices = @transform_0, window_bounds = array<i64: 8, 2048>}, {pipeline_mode = #tpu.pipeline_mode<synchronous>, transform_indices = @transform_1, window_bounds = array<i64: 56, 8>}, {pipeline_mode = #tpu.pipeline_mode<synchronous>, transform_indices = @transform_2, window_bounds = array<i64: 16, 56>}, {pipeline_mode = #tpu.pipeline_mode<synchronous>, transform_indices = @transform_3, window_bounds = array<i64: 8, 17>}, {pipeline_mode = #tpu.pipeline_mode<synchronous>, transform_indices = @transform_4, window_bounds = array<i64: 2048, 128>}, {transform_indices = @transform_5, window_bounds = array<i64: 1, 8, 128>}]} {
    %c0 = arith.constant 0 : index
    %c0_0 = arith.constant 0 : index
    %0 = vector.load %arg2[%c0, %c0_0] : memref<56x8xf32, #tpu.memory_space<vmem>>, vector<56x8xf32>
    %c0_1 = arith.constant 0 : index
    %c0_2 = arith.constant 0 : index
    %1 = vector.load %arg1[%c0_1, %c0_2] : memref<8x2048xf32, #tpu.memory_space<vmem>>, vector<8x2048xf32>
    %cst = arith.constant dense<0.000000e+00> : vector<56x2048xf32>
    %2 = tpu.matmul %0, %1, %cst {dimension_numbers = #tpu.dot_dimension_numbers<[1], [0], [0], [1], [0, 0, 1, 1], [], []>} : vector<56x8xf32>, vector<8x2048xf32>, vector<56x2048xf32> -> vector<56x2048xf32>
    %cst_3 = arith.constant 0.000000e+00 : f32
    %3 = vector.broadcast %cst_3 : f32 to vector<56x2048xf32>
    %4 = arith.maximumf %2, %3 : vector<56x2048xf32>
    %c0_4 = arith.constant 0 : index
    %c0_5 = arith.constant 0 : index
    %5 = vector.load %arg3[%c0_4, %c0_5] : memref<16x56xf32, #tpu.memory_space<vmem>>, vector<16x56xf32>
    %cst_6 = arith.constant dense<0.000000e+00> : vector<16x2048xf32>
    %6 = tpu.matmul %5, %4, %cst_6 {dimension_numbers = #tpu.dot_dimension_numbers<[1], [0], [0], [1], [0, 0, 1, 1], [], []>} : vector<16x56xf32>, vector<56x2048xf32>, vector<16x2048xf32> -> vector<16x2048xf32>
    %cst_7 = arith.constant 0.000000e+00 : f32
    %7 = vector.broadcast %cst_7 : f32 to vector<16x2048xf32>
    %8 = arith.maximumf %6, %7 : vector<16x2048xf32>
    %c0_8 = arith.constant 0 : index
    %c0_9 = arith.constant 0 : index
    %9 = vector.load %arg5[%c0_8, %c0_9] : memref<2048x128xf32, #tpu.memory_space<vmem>>, vector<2048x128xf32>
    %cst_10 = arith.constant dense<0.000000e+00> : vector<16x128xf32>
    %10 = tpu.matmul %8, %9, %cst_10 {dimension_numbers = #tpu.dot_dimension_numbers<[1], [0], [0], [1], [0, 0, 1, 1], [], []>} : vector<16x2048xf32>, vector<2048x128xf32>, vector<16x128xf32> -> vector<16x128xf32>
    %c0_11 = arith.constant 0 : index
    %c0_12 = arith.constant 0 : index
    %11 = vector.load %arg4[%c0_11, %c0_12] : memref<8x17xf32, #tpu.memory_space<vmem>>, vector<8x17xf32>
    %12 = vector.extract_strided_slice %11 {offsets = [0, 0], sizes = [8, 16], strides = [1, 1]} : vector<8x17xf32> to vector<8x16xf32>
    %cst_13 = arith.constant dense<0.000000e+00> : vector<8x128xf32>
    %13 = tpu.matmul %12, %10, %cst_13 {dimension_numbers = #tpu.dot_dimension_numbers<[1], [0], [0], [1], [0, 0, 1, 1], [], []>} : vector<8x16xf32>, vector<16x128xf32>, vector<8x128xf32> -> vector<8x128xf32>
    %14 = vector.extract_strided_slice %11 {offsets = [0, 16], sizes = [8, 1], strides = [1, 1]} : vector<8x17xf32> to vector<8x1xf32>
    %15 = vector.broadcast %14 : vector<8x1xf32> to vector<8x128xf32>
    %16 = arith.addf %13, %15 : vector<8x128xf32>
    %c0_14 = arith.constant 0 : index
    %c0_15 = arith.constant 0 : index
    %c0_16 = arith.constant 0 : index
    %17 = vector.load %arg6[%c0_14, %c0_15, %c0_16] : memref<1x8x128xf32, #tpu.memory_space<vmem>>, vector<1x8x128xf32>
    %18 = vector.shape_cast %17 : vector<1x8x128xf32> to vector<8x128xf32>
    %19 = vector.shape_cast %16 : vector<8x128xf32> to vector<1x8x128xf32>
    tpu.vector_store %arg6[%c0_14, %c0_15, %c0_16], %19 {strides = array<i32>} : memref<1x8x128xf32, #tpu.memory_space<vmem>>, vector<1x8x128xf32>,
    return
  }
  func.func @transform_0(%arg0: i32) -> (i32, i32) {
    %c0_i32 = arith.constant 0 : i32
    %c0_i32_0 = arith.constant 0 : i32
    return %c0_i32, %arg0 : i32, i32
  }
  func.func @transform_1(%arg0: i32) -> (i32, i32) {
    %c0_i32 = arith.constant 0 : i32
    %c0_i32_0 = arith.constant 0 : i32
    %c0_i32_1 = arith.constant 0 : i32
    return %c0_i32, %c0_i32_0 : i32, i32
  }
  func.func @transform_2(%arg0: i32) -> (i32, i32) {
    %c0_i32 = arith.constant 0 : i32
    %c0_i32_0 = arith.constant 0 : i32
    %c0_i32_1 = arith.constant 0 : i32
    return %c0_i32, %c0_i32_0 : i32, i32
  }
  func.func @transform_3(%arg0: i32) -> (i32, i32) {
    %c0_i32 = arith.constant 0 : i32
    %c0_i32_0 = arith.constant 0 : i32
    %c0_i32_1 = arith.constant 0 : i32
    return %c0_i32, %c0_i32_0 : i32, i32
  }
  func.func @transform_4(%arg0: i32) -> (i32, i32) {
    %c0_i32 = arith.constant 0 : i32
    %c0_i32_0 = arith.constant 0 : i32
    %c0_i32_1 = arith.constant 0 : i32
    return %c0_i32, %c0_i32_0 : i32, i32
  }
  func.func @transform_5(%arg0: i32) -> (i32, i32, i32) {
    %c0_i32 = arith.constant 0 : i32
    %c0_i32_0 = arith.constant 0 : i32
    %c0_i32_1 = arith.constant 0 : i32
    return %arg0, %c0_i32, %c0_i32_0 : i32, i32, i32
  }
}

</mosaic_0001>

<llo_original>
// kernel: fwd.1
$region0: #{fwd.1}
  #allocation0 [shape = 'u32[]', space=smem, size = 0x4, offset = 0x4, fixed_abs, tag = 'smem constant byte address 0x4 - core index']
  #allocation1 [shape = 'u32[144,128]{1,0:T(1,128)}', space=vmem, size = 0x12000, scoped, tag = 'internal scratch']
  %s0 = inlined_call_operand.vmem [shape: f32[8,4096], index: 0, kind: input, shape index: {}]
  %s1 = inlined_call_operand.vmem [shape: f32[56,8], index: 1, kind: input, shape index: {}]
  %s2 = inlined_call_operand.vmem [shape: f32[16,56], index: 2, kind: input, shape index: {}]
  %s3 = inlined_call_operand.vmem [shape: f32[8,17], index: 3, kind: input, shape index: {}]
  %s4 = inlined_call_operand.vmem [shape: f32[2048,128], index: 4, kind: input, shape index: {}]
  %s5 = inlined_call_operand.vmem [shape: f32[2,8,128], index: 5, kind: output, shape index: {}]
  %s6 = sld [smem:[#allocation0]]
  $region53: #{fwd.1} parent=0
    _
  %s8 = ssub.s32 1, %s6
  %s9 = scalar_select 0, %s8, %s6
  loop: start=0, step=1, limit=4
  $region2: #{fwd.1} parent=0 // loop_pre_header
    _
  $region3: #{fwd.1} parent=0 // loop_header
    %s11 = sphi 0, %s15
    %p12 = scmp.ge.s32.totalorder %s11, 4
    %s21 = sphi 0, %s23
    %s24 = sphi 0, %s21
    %s25 = sphi 0, %s24
    %s41 = sphi 0, %s25
    %s45 = sphi 0, %s45
    %s47 = sphi 0, %s45
    %s48 = sphi 0, %s47
    %s62 = sphi 0, %s48
    %s66 = sphi 0, %s66
    %s68 = sphi 0, %s66
    %s69 = sphi 0, %s68
    %s83 = sphi 0, %s69
    %s87 = sphi 0, %s87
    %s89 = sphi 0, %s87
    %s90 = sphi 0, %s89
    %s104 = sphi 0, %s90
    %s108 = sphi 0, %s108
    %s110 = sphi 0, %s108
    %s111 = sphi 0, %s110
    %s125 = sphi 0, %s111
    %s131 = sphi 0, %s133
    %s134 = sphi 0, %s131
    %s135 = sphi 0, %s134
    %s151 = sphi 0, %s135
  $region4: #{fwd.1} parent=0 // loop_header_branch
    %14 = sbr.rel (%p12) target = $region8
  $region5: #{fwd.1} parent=0 // loop_body
    %s16 = ssub.s32 %s11, 1
    %s17 = ssub.s32 %s11, 2
    %s18 = sadd.s32 %s11, 1
    %s19 = ssub.s32 %s11, %s18
    %p20 = scmp.eq.s32.totalorder %s19, 0
    %s22 = sadd.s32 %s21, 1
    %s23 = scalar_select %p20, %s21, %s22
    %p26 = pneg %p20
    %p27 = scmp.eq.s32.totalorder %s11, 1
    %p28 = por %p26, %p27
    %p29 = scmp.ne.s32.totalorder %s21, %s24
    %p30 = scmp.eq.s32.totalorder %s11, 0
    %p31 = por %p29, %p30
    %p32 = scmp.ne.s32.totalorder %s21, %s24
    %p33 = scmp.eq.s32.totalorder %s16, 1
    %p34 = por %p32, %p33
    %p35 = scmp.ne.s32.totalorder %s24, %s25
    %p36 = scmp.eq.s32.totalorder %s16, 0
    %p37 = por %p35, %p36
    %p38 = scmp.ne.s32.totalorder %s24, %s25
    %p39 = scmp.eq.s32.totalorder %s17, 1
    %p40 = por %p38, %p39
    %p42 = scmp.ne.s32.totalorder %s25, %s41
    %p43 = scmp.eq.s32.totalorder %s17, 0
    %p44 = por %p42, %p43
    %s46 = sadd.s32 %s45, 1
    %p49 = scmp.eq.s32.totalorder %s11, 1
    %p50 = scmp.ne.s32.totalorder %s45, %s47
    %p51 = scmp.eq.s32.totalorder %s11, 0
    %p52 = por %p50, %p51
    %p53 = scmp.ne.s32.totalorder %s45, %s47
    %p54 = scmp.eq.s32.totalorder %s16, 1
    %p55 = por %p53, %p54
    %p56 = scmp.ne.s32.totalorder %s47, %s48
    %p57 = scmp.eq.s32.totalorder %s16, 0
    %p58 = por %p56, %p57
    %p59 = scmp.ne.s32.totalorder %s47, %s48
    %p60 = scmp.eq.s32.totalorder %s17, 1
    %p61 = por %p59, %p60
    %p63 = scmp.ne.s32.totalorder %s48, %s62
    %p64 = scmp.eq.s32.totalorder %s17, 0
    %p65 = por %p63, %p64
    %s67 = sadd.s32 %s66, 1
    %p70 = scmp.eq.s32.totalorder %s11, 1
    %p71 = scmp.ne.s32.totalorder %s66, %s68
    %p72 = scmp.eq.s32.totalorder %s11, 0
    %p73 = por %p71, %p72
    %p74 = scmp.ne.s32.totalorder %s66, %s68
    %p75 = scmp.eq.s32.totalorder %s16, 1
    %p76 = por %p74, %p75
    %p77 = scmp.ne.s32.totalorder %s68, %s69
    %p78 = scmp.eq.s32.totalorder %s16, 0
    %p79 = por %p77, %p78
    %p80 = scmp.ne.s32.totalorder %s68, %s69
    %p81 = scmp.eq.s32.totalorder %s17, 1
    %p82 = por %p80, %p81
    %p84 = scmp.ne.s32.totalorder %s69, %s83
    %p85 = scmp.eq.s32.totalorder %s17, 0
    %p86 = por %p84, %p85
    %s88 = sadd.s32 %s87, 1
    %p91 = scmp.eq.s32.totalorder %s11, 1
    %p92 = scmp.ne.s32.totalorder %s87, %s89
    %p93 = scmp.eq.s32.totalorder %s11, 0
    %p94 = por %p92, %p93
    %p95 = scmp.ne.s32.totalorder %s87, %s89
    %p96 = scmp.eq.s32.totalorder %s16, 1
    %p97 = por %p95, %p96
    %p98 = scmp.ne.s32.totalorder %s89, %s90
    %p99 = scmp.eq.s32.totalorder %s16, 0
    %p100 = por %p98, %p99
    %p101 = scmp.ne.s32.totalorder %s89, %s90
    %p102 = scmp.eq.s32.totalorder %s17, 1
    %p103 = por %p101, %p102
    %p105 = scmp.ne.s32.totalorder %s90, %s104
    %p106 = scmp.eq.s32.totalorder %s17, 0
    %p107 = por %p105, %p106
    %s109 = sadd.s32 %s108, 1
    %p112 = scmp.eq.s32.totalorder %s11, 1
    %p113 = scmp.ne.s32.totalorder %s108, %s110
    %p114 = scmp.eq.s32.totalorder %s11, 0
    %p115 = por %p113, %p114
    %p116 = scmp.ne.s32.totalorder %s108, %s110
    %p117 = scmp.eq.s32.totalorder %s16, 1
    %p118 = por %p116, %p117
    %p119 = scmp.ne.s32.totalorder %s110, %s111
    %p120 = scmp.eq.s32.totalorder %s16, 0
    %p121 = por %p119, %p120
    %p122 = scmp.ne.s32.totalorder %s110, %s111
    %p123 = scmp.eq.s32.totalorder %s17, 1
    %p124 = por %p122, %p123
    %p126 = scmp.ne.s32.totalorder %s111, %s125
    %p127 = scmp.eq.s32.totalorder %s17, 0
    %p128 = por %p126, %p127
    %s129 = ssub.s32 %s11, %s18
    %p130 = scmp.eq.s32.totalorder %s129, 0
    %s132 = sadd.s32 %s131, 1
    %s133 = scalar_select %p130, %s131, %s132
    %p136 = pneg %p130
    %p137 = scmp.eq.s32.totalorder %s11, 1
    %p138 = por %p136, %p137
    %p139 = scmp.ne.s32.totalorder %s131, %s134
    %p140 = scmp.eq.s32.totalorder %s11, 0
    %p141 = por %p139, %p140
    %p142 = scmp.ne.s32.totalorder %s131, %s134
    %p143 = scmp.eq.s32.totalorder %s16, 1
    %p144 = por %p142, %p143
    %p145 = scmp.ne.s32.totalorder %s134, %s135
    %p146 = scmp.eq.s32.totalorder %s16, 0
    %p147 = por %p145, %p146
    %p148 = scmp.ne.s32.totalorder %s134, %s135
    %p149 = scmp.eq.s32.totalorder %s17, 1
    %p150 = por %p148, %p149
    %p152 = scmp.ne.s32.totalorder %s135, %s151
    %p153 = scmp.eq.s32.totalorder %s17, 0
    %p154 = por %p152, %p153
    %p155 = scmp.le.s32.totalorder 1, %s11
    %p156 = scmp.lt.s32.totalorder %s11, 3
    %p157 = pnand %p155, %p156
    %p158 = pneg %p157
    // Predicated region
    $region9: #{fwd.1} parent=5 // pred_check
      _
    $region10: #{fwd.1} parent=5 // pred_check_branch
      %160 = sbr.rel (%p157) target = $region12
    $region11: #{fwd.1} parent=5 // pred_region
      %s161 = ssub.s32 %s11, 1
      // Predicated region
      $region13: #{fwd.1} parent=11 // pred_check
        %p162 = pneg %p58
      $region14: #{fwd.1} parent=11 // pred_check_branch
        %164 = sbr.rel (%p162) target = $region16
      $region15: #{fwd.1} parent=11 // pred_region
        _
      $region16: #{fwd.1} parent=11 // pred_fallthru
        _
      // Predicated region
      $region17: #{fwd.1} parent=11 // pred_check
        %p165 = pneg %p79
      $region18: #{fwd.1} parent=11 // pred_check_branch
        %167 = sbr.rel (%p165) target = $region20
      $region19: #{fwd.1} parent=11 // pred_region
        _
      $region20: #{fwd.1} parent=11 // pred_fallthru
        _
      // Predicated region
      $region21: #{fwd.1} parent=11 // pred_check
        %p168 = pneg %p100
      $region22: #{fwd.1} parent=11 // pred_check_branch
        %170 = sbr.rel (%p168) target = $region24
      $region23: #{fwd.1} parent=11 // pred_region
        _
      $region24: #{fwd.1} parent=11 // pred_fallthru
        _
      // Predicated region
      $region25: #{fwd.1} parent=11 // pred_check
        %p171 = pneg %p121
      $region26: #{fwd.1} parent=11 // pred_check_branch
        %173 = sbr.rel (%p171) target = $region28
      $region27: #{fwd.1} parent=11 // pred_region
        _
      $region28: #{fwd.1} parent=11 // pred_fallthru
        _
    $region12: #{fwd.1} parent=5 // pred_fallthru
      _
    %p174 = scmp.lt.s32.totalorder %s11, 2
    // Predicated region
    $region29: #{fwd.1} parent=5 // pred_check
      %p175 = pneg %p174
    $region30: #{fwd.1} parent=5 // pred_check_branch
      %177 = sbr.rel (%p175) target = $region32
    $region31: #{fwd.1} parent=5 // pred_region
      // Predicated region
      $region33: #{fwd.1} parent=31 // pred_check
        %p178 = pneg %p31
      $region34: #{fwd.1} parent=31 // pred_check_branch
        %180 = sbr.rel (%p178) target = $region36
      $region35: #{fwd.1} parent=31 // pred_region
        %s181 = smul.u32 16, %s11
        %p182 = scmp.lt.s32.totalorder %s181, 31
        %s183 = scalar_select %p182, %s181, 31
        %s184 = smul.addr %s183, 8
        %s185 = scalar_lea.vmem %s0, %s184
        %s186 = smul.u32 16, %s11
      $region36: #{fwd.1} parent=31 // pred_fallthru
        _
    $region32: #{fwd.1} parent=5 // pred_fallthru
      _
    %p187 = scmp.le.s32.totalorder 1, %s11
    %p188 = scmp.lt.s32.totalorder %s11, 3
    %p189 = pnand %p187, %p188
    %p190 = pneg %p189
    // Predicated region
    $region37: #{fwd.1} parent=5 // pred_check
      _
    $region38: #{fwd.1} parent=5 // pred_check_branch
      %192 = sbr.rel (%p189) target = $region40
    $region39: #{fwd.1} parent=5 // pred_region
      %s193 = ssub.s32 %s11, 1
      %s194 = smul.u32 16, %s16
      %p195 = scmp.lt.s32.totalorder %s194, 31
      %s196 = scalar_select %p195, %s194, 31
      %s197 = smul.addr %s196, 8
      %s198 = scalar_lea.vmem %s0, %s197
      %p199 = pneg %p37
      %p200 = pneg %p34
      %p201 = pneg %p58
      %p202 = pneg %p55
      %p203 = pneg %p79
      %p204 = pneg %p76
      %p205 = pneg %p100
      %p206 = pneg %p97
      %p207 = pneg %p121
      %p208 = pneg %p118
      %p209 = pneg %p147
      %p210 = pneg %p144
      %p211 = scmp.lt.s32.totalorder %s16, 1
      %s212 = scalar_select %p211, %s16, 1
      %s213 = smul.addr %s212, 8
      %s214 = scalar_lea.vmem %s5, %s213
      %s215 = smul.u32 16, %s16
      %p216 = scmp.lt.s32.totalorder %s215, 31
      %s217 = scalar_select %p216, %s215, 31
      %s218 = smul.addr %s217, 8
      %s219 = scalar_lea.vmem %s0, %s218
      %s220 = smul.u32 16, %s16
      %p221 = scmp.lt.s32.totalorder %s16, 1
      %s222 = scalar_select %p221, %s16, 1
      %s223 = smul.addr %s222, 8
      %s224 = scalar_lea.vmem %s5, %s223
      %v225 = vld [vmem:[%s1] sm:$0xff]
      %v226 = vld [vmem:[%s1 + $0x8] sm:$0xff]
      %v227 = vld [vmem:[%s1 + $0x10] sm:$0xff]
      %v228 = vld [vmem:[%s1 + $0x18] sm:$0xff]
      %v229 = vld [vmem:[%s1 + $0x20] sm:$0xff]
      %v230 = vld [vmem:[%s1 + $0x28] sm:$0xff]
      %v231 = vld [vmem:[%s1 + $0x30] sm:$0xff]
      %v232 = vld [vmem:[%s219] sm:$0xff]
      %v233 = vld [vmem:[%s219 + $0x8] sm:$0xff]
      %v234 = vld [vmem:[%s219 + $0x10] sm:$0xff]
      %v235 = vld [vmem:[%s219 + $0x18] sm:$0xff]
      %v236 = vld [vmem:[%s219 + $0x20] sm:$0xff]
      %v237 = vld [vmem:[%s219 + $0x28] sm:$0xff]
      %v238 = vld [vmem:[%s219 + $0x30] sm:$0xff]
      %v239 = vld [vmem:[%s219 + $0x38] sm:$0xff]
      %v240 = vld [vmem:[%s219 + $0x40] sm:$0xff]
      %v241 = vld [vmem:[%s219 + $0x48] sm:$0xff]
      %v242 = vld [vmem:[%s219 + $0x50] sm:$0xff]
      %v243 = vld [vmem:[%s219 + $0x58] sm:$0xff]
      %v244 = vld [vmem:[%s219 + $0x60] sm:$0xff]
      %v245 = vld [vmem:[%s219 + $0x68] sm:$0xff]
      %v246 = vld [vmem:[%s219 + $0x70] sm:$0xff]
      %v247 = vld [vmem:[%s219 + $0x78] sm:$0xff]
      %vm248 = vcmask 64512
      %v250 = vsel %vm248, %v225, 0
      %v253 = vsel %vm248, %v226, 0
      %v256 = vsel %vm248, %v227, 0
      %v259 = vsel %vm248, %v228, 0
      %v262 = vsel %vm248, %v229, 0
      %v265 = vsel %vm248, %v230, 0
      %v268 = vsel %vm248, %v231, 0
      %270 = vmatprep.subr.mxu0 %v233
      %271 = vmatpush1.msra.mxu0 %v232
      %272 = vmatprep.subr.mxu0 0.0
      %273 = vmatpush1.msra.mxu0 0.0
      %274 = vmatprep.subr.mxu0 0.0
      %275 = vmatpush1.msra.mxu0 0.0
      %276 = vmatprep.subr.mxu0 0.0
      %277 = vmatpush1.msra.mxu0 0.0
      %278 = vmatprep.subr.mxu0 0.0
      %279 = vmatpush1.msra.mxu0 0.0
      %280 = vmatprep.subr.mxu0 0.0
      %281 = vmatpush1.msra.mxu0 0.0
      %282 = vmatprep.subr.mxu0 0.0
      %283 = vmatpush1.msra.mxu0 0.0
      %284 = vmatprep.subr.mxu0 0.0
      %285 = vmatpush1.msra.mxu0 0.0
      %286 = vmatprep.subr.mxu0 0.0
      %287 = vmatpush1.msra.mxu0 0.0
      %288 = vmatprep.subr.mxu0 0.0
      %289 = vmatpush1.msra.mxu0 0.0
      %290 = vmatprep.subr.mxu0 0.0
      %291 = vmatpush1.msra.mxu0 0.0
      %292 = vmatprep.subr.mxu0 0.0
      %293 = vmatpush1.msra.mxu0 0.0
      %294 = vmatprep.subr.mxu0 0.0
      %295 = vmatpush1.msra.mxu0 0.0
      %296 = vmatprep.subr.mxu0 0.0
      %297 = vmatpush1.msra.mxu0 0.0
      %298 = vmatprep.subr.mxu0 0.0
      %299 = vmatpush1.msra.mxu0 0.0
      %300 = vmatprep.subr.mxu0 0.0
      %301 = vmatpush1.msra.mxu0 0.0
      %302 = vmatprep.subr.mxu0 0.0
      %303 = vmatpush1.msra.mxu0 0.0
      %304 = vmatprep.subr.mxu0 0.0
      %305 = vmatpush1.msra.mxu0 0.0
      %306 = vmatprep.subr.mxu0 0.0
      %307 = vmatpush1.msra.mxu0 0.0
      %308 = vmatprep.subr.mxu0 0.0
      %309 = vmatpush1.msra.mxu0 0.0
      %310 = vmatprep.subr.mxu0 0.0
      %311 = vmatpush1.msra.mxu0 0.0
      %312 = vmatprep.subr.mxu0 0.0
      %313 = vmatpush1.msra.mxu0 0.0
      %314 = vmatprep.subr.mxu0 0.0
      %315 = vmatpush1.msra.mxu0 0.0
      %316 = vmatprep.subr.mxu0 0.0
      %317 = vmatpush1.msra.mxu0 0.0
      %318 = vmatprep.subr.mxu0 0.0
      %319 = vmatpush1.msra.mxu0 0.0
      %320 = vmatprep.subr.mxu0 0.0
      %321 = vmatpush1.msra.mxu0 0.0
      %322 = vmatprep.subr.mxu0 0.0
      %323 = vmatpush1.msra.mxu0 0.0
      %324 = vmatprep.subr.mxu0 0.0
      %325 = vmatpush1.msra.mxu0 0.0
      %326 = vmatprep.subr.mxu0 0.0
      %327 = vmatpush1.msra.mxu0 0.0
      %328 = vmatprep.subr.mxu0 0.0
      %329 = vmatpush1.msra.mxu0 0.0
      %330 = vmatprep.subr.mxu0 0.0
      %331 = vmatpush1.msra.mxu0 0.0
      %332 = vmatprep.subr.mxu0 0.0
      %333 = vmatpush1.msra.mxu0 0.0
      %334 = vmatprep.mubr.f32.mxu0 0.0
      %335 = vmatmul.mubr.f32.gmra.mrb[0].mxu0 %v250
      %v336 = vpop.f32.mrb[0].mxu0
      %v337 = vadd.f32 0.0, %v336
      %v338 = vpop.f32.mrb[0].mxu0
      %v339 = vadd.f32 0.0, %v338
      %340 = vmatprep.mubr.f32.mxu0 0.0
      %341 = vmatmul.mubr.f32.gmra.mrb[0].mxu0 %v253
      %v342 = vpop.f32.mrb[0].mxu0
      %v343 = vadd.f32 0.0, %v342
      %v344 = vpop.f32.mrb[0].mxu0
      %v345 = vadd.f32 0.0, %v344
      %346 = vmatprep.mubr.f32.mxu0 0.0
      %347 = vmatmul.mubr.f32.gmra.mrb[0].mxu0 %v256
      %v348 = vpop.f32.mrb[0].mxu0
      %v349 = vadd.f32 0.0, %v348
      %v350 = vpop.f32.mrb[0].mxu0
      %v351 = vadd.f32 0.0, %v350
      %352 = vmatprep.mubr.f32.mxu0 0.0
      %353 = vmatmul.mubr.f32.gmra.mrb[0].mxu0 %v259
      %v354 = vpop.f32.mrb[0].mxu0
      %v355 = vadd.f32 0.0, %v354
      %v356 = vpop.f32.mrb[0].mxu0
      %v357 = vadd.f32 0.0, %v356
      %358 = vmatprep.mubr.f32.mxu0 0.0
      %359 = vmatmul.mubr.f32.gmra.mrb[0].mxu0 %v262
      %v360 = vpop.f32.mrb[0].mxu0
      %v361 = vadd.f32 0.0, %v360
      %v362 = vpop.f32.mrb[0].mxu0
      %v363 = vadd.f32 0.0, %v362
      %364 = vmatprep.mubr.f32.mxu0 0.0
      %365 = vmatmul.mubr.f32.gmra.mrb[0].mxu0 %v265
      %v366 = vpop.f32.mrb[0].mxu0
      %v367 = vadd.f32 0.0, %v366
      %v368 = vpop.f32.mrb[0].mxu0
      %v369 = vadd.f32 0.0, %v368
      %370 = vmatprep.mubr.f32.mxu0 0.0
      %371 = vmatmul.mubr.f32.gmra.mrb[0].mxu0 %v268
      %v372 = vpop.f32.mrb[0].mxu0
      %v373 = vadd.f32 0.0, %v372
      %v374 = vpop.f32.mrb[0].mxu0
      %v375 = vadd.f32 0.0, %v374
      %376 = vdwg.mxu0
      %377 = vmatprep.subr.mxu0 %v235
      %378 = vmatpush1.msra.mxu0 %v234
      %379 = vmatprep.subr.mxu0 0.0
      %380 = vmatpush1.msra.mxu0 0.0
      %381 = vmatprep.subr.mxu0 0.0
      %382 = vmatpush1.msra.mxu0 0.0
      %383 = vmatprep.subr.mxu0 0.0
      %384 = vmatpush1.msra.mxu0 0.0
      %385 = vmatprep.subr.mxu0 0.0
      %386 = vmatpush1.msra.mxu0 0.0
      %387 = vmatprep.subr.mxu0 0.0
      %388 = vmatpush1.msra.mxu0 0.0
      %389 = vmatprep.subr.mxu0 0.0
      %390 = vmatpush1.msra.mxu0 0.0
      %391 = vmatprep.subr.mxu0 0.0
      %392 = vmatpush1.msra.mxu0 0.0
      %393 = vmatprep.subr.mxu0 0.0
      %394 = vmatpush1.msra.mxu0 0.0
      %395 = vmatprep.subr.mxu0 0.0
      %396 = vmatpush1.msra.mxu0 0.0
      %397 = vmatprep.subr.mxu0 0.0
      %398 = vmatpush1.msra.mxu0 0.0
      %399 = vmatprep.subr.mxu0 0.0
      %400 = vmatpush1.msra.mxu0 0.0
      %401 = vmatprep.subr.mxu0 0.0
      %402 = vmatpush1.msra.mxu0 0.0
      %403 = vmatprep.subr.mxu0 0.0
      %404 = vmatpush1.msra.mxu0 0.0
      %405 = vmatprep.subr.mxu0 0.0
      %406 = vmatpush1.msra.mxu0 0.0
      %407 = vmatprep.subr.mxu0 0.0
      %408 = vmatpush1.msra.mxu0 0.0
      %409 = vmatprep.subr.mxu0 0.0
      %410 = vmatpush1.msra.mxu0 0.0
      %411 = vmatprep.subr.mxu0 0.0
      %412 = vmatpush1.msra.mxu0 0.0
      %413 = vmatprep.subr.mxu0 0.0
      %414 = vmatpush1.msra.mxu0 0.0
      %415 = vmatprep.subr.mxu0 0.0
      %416 = vmatpush1.msra.mxu0 0.0
      %417 = vmatprep.subr.mxu0 0.0
      %418 = vmatpush1.msra.mxu0 0.0
      %419 = vmatprep.subr.mxu0 0.0
      %420 = vmatpush1.msra.mxu0 0.0
      %421 = vmatprep.subr.mxu0 0.0
      %422 = vmatpush1.msra.mxu0 0.0
      %423 = vmatprep.subr.mxu0 0.0
      %424 = vmatpush1.msra.mxu0 0.0
      %425 = vmatprep.subr.mxu0 0.0
      %426 = vmatpush1.msra.mxu0 0.0
      %427 = vmatprep.subr.mxu0 0.0
      %428 = vmatpush1.msra.mxu0 0.0
      %429 = vmatprep.subr.mxu0 0.0
      %430 = vmatpush1.msra.mxu0 0.0
      %431 = vmatprep.subr.mxu0 0.0
      %432 = vmatpush1.msra.mxu0 0.0
      %433 = vmatprep.subr.mxu0 0.0
      %434 = vmatpush1.msra.mxu0 0.0
      %435 = vmatprep.subr.mxu0 0.0
      %436 = vmatpush1.msra.mxu0 0.0
      %437 = vmatprep.subr.mxu0 0.0
      %438 = vmatpush1.msra.mxu0 0.0
      %439 = vmatprep.subr.mxu0 0.0
      %440 = vmatpush1.msra.mxu0 0.0
      %441 = vmatprep.mubr.f32.mxu0 0.0
      %442 = vmatmul.mubr.f32.gmra.mrb[0].mxu0 %v250
      %v443 = vpop.f32.mrb[0].mxu0
      %v444 = vadd.f32 0.0, %v443
      %v445 = vpop.f32.mrb[0].mxu0
      %v446 = vadd.f32 0.0, %v445
      %447 = vmatprep.mubr.f32.mxu0 0.0
      %448 = vmatmul.mubr.f32.gmra.mrb[0].mxu0 %v253
      %v449 = vpop.f32.mrb[0].mxu0
      %v450 = vadd.f32 0.0, %v449
      %v451 = vpop.f32.mrb[0].mxu0
      %v452 = vadd.f32 0.0, %v451
      %453 = vmatprep.mubr.f32.mxu0 0.0
      %454 = vmatmul.mubr.f32.gmra.mrb[0].mxu0 %v256
      %v455 = vpop.f32.mrb[0].mxu0
      %v456 = vadd.f32 0.0, %v455
      %v457 = vpop.f32.mrb[0].mxu0
      %v458 = vadd.f32 0.0, %v457
      %459 = vmatprep.mubr.f32.mxu0 0.0
      %460 = vmatmul.mubr.f32.gmra.mrb[0].mxu0 %v259
      %v461 = vpop.f32.mrb[0].mxu0
      %v462 = vadd.f32 0.0, %v461
      %v463 = vpop.f32.mrb[0].mxu0
      %v464 = vadd.f32 0.0, %v463
      %465 = vmatprep.mubr.f32.mxu0 0.0
      %466 = vmatmul.mubr.f32.gmra.mrb[0].mxu0 %v262
      %v467 = vpop.f32.mrb[0].mxu0
      %v468 = vadd.f32 0.0, %v467
      %v469 = vpop.f32.mrb[0].mxu0
      %v470 = vadd.f32 0.0, %v469
      %471 = vmatprep.mubr.f32.mxu0 0.0
      %472 = vmatmul.mubr.f32.gmra.mrb[0].mxu0 %v265
      %v473 = vpop.f32.mrb[0].mxu0
      %v474 = vadd.f32 0.0, %v473
      %v475 = vpop.f32.mrb[0].mxu0
      %v476 = vadd.f32 0.0, %v475
      %477 = vmatprep.mubr.f32.mxu0 0.0
      %478 = vmatmul.mubr.f32.gmra.mrb[0].mxu0 %v268
      %v479 = vpop.f32.mrb[0].mxu0
      %v480 = vadd.f32 0.0, %v479
      %v481 = vpop.f32.mrb[0].mxu0
      %v482 = vadd.f32 0.0, %v481
      %483 = vdwg.mxu0
      %484 = vmatprep.subr.mxu0 %v237
      %485 = vmatpush1.msra.mxu0 %v236
      %486 = vmatprep.subr.mxu0 0.0
      %487 = vmatpush1.msra.mxu0 0.0
      %488 = vmatprep.subr.mxu0 0.0
      %489 = vmatpush1.msra.mxu0 0.0
      %490 = vmatprep.subr.mxu0 0.0
      %491 = vmatpush1.msra.mxu0 0.0
      %492 = vmatprep.subr.mxu0 0.0
      %493 = vmatpush1.msra.mxu0 0.0
      %494 = vmatprep.subr.mxu0 0.0
      %495 = vmatpush1.msra.mxu0 0.0
      %496 = vmatprep.subr.mxu0 0.0
      %497 = vmatpush1.msra.mxu0 0.0
      %498 = vmatprep.subr.mxu0 0.0
      %499 = vmatpush1.msra.mxu0 0.0
      %500 = vmatprep.subr.mxu0 0.0
      %501 = vmatpush1.msra.mxu0 0.0
      %502 = vmatprep.subr.mxu0 0.0
      %503 = vmatpush1.msra.mxu0 0.0
      %504 = vmatprep.subr.mxu0 0.0
      %505 = vmatpush1.msra.mxu0 0.0
      %506 = vmatprep.subr.mxu0 0.0
      %507 = vmatpush1.msra.mxu0 0.0
      %508 = vmatprep.subr.mxu0 0.0
      %509 = vmatpush1.msra.mxu0 0.0
      %510 = vmatprep.subr.mxu0 0.0
      %511 = vmatpush1.msra.mxu0 0.0
      %512 = vmatprep.subr.mxu0 0.0
      %513 = vmatpush1.msra.mxu0 0.0
      %514 = vmatprep.subr.mxu0 0.0
      %515 = vmatpush1.msra.mxu0 0.0
      %516 = vmatprep.subr.mxu0 0.0
      %517 = vmatpush1.msra.mxu0 0.0
      %518 = vmatprep.subr.mxu0 0.0
      %519 = vmatpush1.msra.mxu0 0.0
      %520 = vmatprep.subr.mxu0 0.0
      %521 = vmatpush1.msra.mxu0 0.0
      %522 = vmatprep.subr.mxu0 0.0
      %523 = vmatpush1.msra.mxu0 0.0
      %524 = vmatprep.subr.mxu0 0.0
      %525 = vmatpush1.msra.mxu0 0.0
      %526 = vmatprep.subr.mxu0 0.0
      %527 = vmatpush1.msra.mxu0 0.0
      %528 = vmatprep.subr.mxu0 0.0
      %529 = vmatpush1.msra.mxu0 0.0
      %530 = vmatprep.subr.mxu0 0.0
      %531 = vmatpush1.msra.mxu0 0.0
      %532 = vmatprep.subr.mxu0 0.0
      %533 = vmatpush1.msra.mxu0 0.0
      %534 = vmatprep.subr.mxu0 0.0
      %535 = vmatpush1.msra.mxu0 0.0
      %536 = vmatprep.subr.mxu0 0.0
      %537 = vmatpush1.msra.mxu0 0.0
      %538 = vmatprep.subr.mxu0 0.0
      %539 = vmatpush1.msra.mxu0 0.0
      %540 = vmatprep.subr.mxu0 0.0
      %541 = vmatpush1.msra.mxu0 0.0
      %542 = vmatprep.subr.mxu0 0.0
      %543 = vmatpush1.msra.mxu0 0.0
      %544 = vmatprep.subr.mxu0 0.0
      %545 = vmatpush1.msra.mxu0 0.0
      %546 = vmatprep.subr.mxu0 0.0
      %547 = vmatpush1.msra.mxu0 0.0
      %548 = vmatprep.mubr.f32.mxu0 0.0
      %549 = vmatmul.mubr.f32.gmra.mrb[0].mxu0 %v250
      %v550 = vpop.f32.mrb[0].mxu0
      %v551 = vadd.f32 0.0, %v550
      %v552 = vpop.f32.mrb[0].mxu0
      %v553 = vadd.f32 0.0, %v552
      %554 = vmatprep.mubr.f32.mxu0 0.0
      %555 = vmatmul.mubr.f32.gmra.mrb[0].mxu0 %v253
      %v556 = vpop.f32.mrb[0].mxu0
      %v557 = vadd.f32 0.0, %v556
      %v558 = vpop.f32.mrb[0].mxu0
      %v559 = vadd.f32 0.0, %v558
      %560 = vmatprep.mubr.f32.mxu0 0.0
      %561 = vmatmul.mubr.f32.gmra.mrb[0].mxu0 %v256
      %v562 = vpop.f32.mrb[0].mxu0
      %v563 = vadd.f32 0.0, %v562
      %v564 = vpop.f32.mrb[0].mxu0
      %v565 = vadd.f32 0.0, %v564
      %566 = vmatprep.mubr.f32.mxu0 0.0
      %567 = vmatmul.mubr.f32.gmra.mrb[0].mxu0 %v259
      %v568 = vpop.f32.mrb[0].mxu0
      %v569 = vadd.f32 0.0, %v568
      %v570 = vpop.f32.mrb[0].mxu0
      %v571 = vadd.f32 0.0, %v570
      %572 = vmatprep.mubr.f32.mxu0 0.0
      %573 = vmatmul.mubr.f32.gmra.mrb[0].mxu0 %v262
      %v574 = vpop.f32.mrb[0].mxu0
      %v575 = vadd.f32 0.0, %v574
      %v576 = vpop.f32.mrb[0].mxu0
      %v577 = vadd.f32 0.0, %v576
      %578 = vmatprep.mubr.f32.mxu0 0.0
      %579 = vmatmul.mubr.f32.gmra.mrb[0].mxu0 %v265
      %v580 = vpop.f32.mrb[0].mxu0
      %v581 = vadd.f32 0.0, %v580
      %v582 = vpop.f32.mrb[0].mxu0
      %v583 = vadd.f32 0.0, %v582
      %584 = vmatprep.mubr.f32.mxu0 0.0
      %585 = vmatmul.mubr.f32.gmra.mrb[0].mxu0 %v268
      %v586 = vpop.f32.mrb[0].mxu0
      %v587 = vadd.f32 0.0, %v586
      %v588 = vpop.f32.mrb[0].mxu0
      %v589 = vadd.f32 0.0, %v588
      %590 = vdwg.mxu0
      %591 = vmatprep.subr.mxu0 %v239
      %592 = vmatpush1.msra.mxu0 %v238
      %593 = vmatprep.subr.mxu0 0.0
      %594 = vmatpush1.msra.mxu0 0.0
      %595 = vmatprep.subr.mxu0 0.0
      %596 = vmatpush1.msra.mxu0 0.0
      %597 = vmatprep.subr.mxu0 0.0
      %598 = vmatpush1.msra.mxu0 0.0
      %599 = vmatprep.subr.mxu0 0.0
      %600 = vmatpush1.msra.mxu0 0.0
      %601 = vmatprep.subr.mxu0 0.0
      %602 = vmatpush1.msra.mxu0 0.0
      %603 = vmatprep.subr.mxu0 0.0
      %604 = vmatpush1.msra.mxu0 0.0
      %605 = vmatprep.subr.mxu0 0.0
      %606 = vmatpush1.msra.mxu0 0.0
      %607 = vmatprep.subr.mxu0 0.0
      %608 = vmatpush1.msra.mxu0 0.0
      %609 = vmatprep.subr.mxu0 0.0
      %610 = vmatpush1.msra.mxu0 0.0
      %611 = vmatprep.subr.mxu0 0.0
      %612 = vmatpush1.msra.mxu0 0.0
      %613 = vmatprep.subr.mxu0 0.0
      %614 = vmatpush1.msra.mxu0 0.0
      %615 = vmatprep.subr.mxu0 0.0
      %616 = vmatpush1.msra.mxu0 0.0
      %617 = vmatprep.subr.mxu0 0.0
      %618 = vmatpush1.msra.mxu0 0.0
      %619 = vmatprep.subr.mxu0 0.0
      %620 = vmatpush1.msra.mxu0 0.0
      %621 = vmatprep.subr.mxu0 0.0
      %622 = vmatpush1.msra.mxu0 0.0
      %623 = vmatprep.subr.mxu0 0.0
      %624 = vmatpush1.msra.mxu0 0.0
      %625 = vmatprep.subr.mxu0 0.0
      %626 = vmatpush1.msra.mxu0 0.0
      %627 = vmatprep.subr.mxu0 0.0
      %628 = vmatpush1.msra.mxu0 0.0
      %629 = vmatprep.subr.mxu0 0.0
      %630 = vmatpush1.msra.mxu0 0.0
      %631 = vmatprep.subr.mxu0 0.0
      %632 = vmatpush1.msra.mxu0 0.0
      %633 = vmatprep.subr.mxu0 0.0
      %634 = vmatpush1.msra.mxu0 0.0
      %635 = vmatprep.subr.mxu0 0.0
      %636 = vmatpush1.msra.mxu0 0.0
      %637 = vmatprep.subr.mxu0 0.0
      %638 = vmatpush1.msra.mxu0 0.0
      %639 = vmatprep.subr.mxu0 0.0
      %640 = vmatpush1.msra.mxu0 0.0
      %641 = vmatprep.subr.mxu0 0.0
      %642 = vmatpush1.msra.mxu0 0.0
      %643 = vmatprep.subr.mxu0 0.0
      %644 = vmatpush1.msra.mxu0 0.0
      %645 = vmatprep.subr.mxu0 0.0
      %646 = vmatpush1.msra.mxu0 0.0
      %647 = vmatprep.subr.mxu0 0.0
      %648 = vmatpush1.msra.mxu0 0.0
      %649 = vmatprep.subr.mxu0 0.0
      %650 = vmatpush1.msra.mxu0 0.0
      %651 = vmatprep.subr.mxu0 0.0
      %652 = vmatpush1.msra.mxu0 0.0
      %653 = vmatprep.subr.mxu0 0.0
      %654 = vmatpush1.msra.mxu0 0.0
      %655 = vmatprep.mubr.f32.mxu0 0.0
      %656 = vmatmul.mubr.f32.gmra.mrb[0].mxu0 %v250
      %v657 = vpop.f32.mrb[0].mxu0
      %v658 = vadd.f32 0.0, %v657
      %v659 = vpop.f32.mrb[0].mxu0
      %v660 = vadd.f32 0.0, %v659
      %661 = vmatprep.mubr.f32.mxu0 0.0
      %662 = vmatmul.mubr.f32.gmra.mrb[0].mxu0 %v253
      %v663 = vpop.f32.mrb[0].mxu0
      %v664 = vadd.f32 0.0, %v663
      %v665 = vpop.f32.mrb[0].mxu0
      %v666 = vadd.f32 0.0, %v665
      %667 = vmatprep.mubr.f32.mxu0 0.0
      %668 = vmatmul.mubr.f32.gmra.mrb[0].mxu0 %v256
      %v669 = vpop.f32.mrb[0].mxu0
      %v670 = vadd.f32 0.0, %v669
      %v671 = vpop.f32.mrb[0].mxu0
      %v672 = vadd.f32 0.0, %v671
      %673 = vmatprep.mubr.f32.mxu0 0.0
      %674 = vmatmul.mubr.f32.gmra.mrb[0].mxu0 %v259
      %v675 = vpop.f32.mrb[0].mxu0
      %v676 = vadd.f32 0.0, %v675
      %v677 = vpop.f32.mrb[0].mxu0
      %v678 = vadd.f32 0.0, %v677
      %679 = vmatprep.mubr.f32.mxu0 0.0
      %680 = vmatmul.mubr.f32.gmra.mrb[0].mxu0 %v262
      %v681 = vpop.f32.mrb[0].mxu0
      %v682 = vadd.f32 0.0, %v681
      %v683 = vpop.f32.mrb[0].mxu0
      %v684 = vadd.f32 0.0, %v683
      %685 = vmatprep.mubr.f32.mxu0 0.0
      %686 = vmatmul.mubr.f32.gmra.mrb[0].mxu0 %v265
      %v687 = vpop.f32.mrb[0].mxu0
      %v688 = vadd.f32 0.0, %v687
      %v689 = vpop.f32.mrb[0].mxu0
      %v690 = vadd.f32 0.0, %v689
      %691 = vmatprep.mubr.f32.mxu0 0.0
      %692 = vmatmul.mubr.f32.gmra.mrb[0].mxu0 %v268
      %v693 = vpop.f32.mrb[0].mxu0
      %v694 = vadd.f32 0.0, %v693
      %v695 = vpop.f32.mrb[0].mxu0
      %v696 = vadd.f32 0.0, %v695
      %697 = vdwg.mxu0
      %698 = vmatprep.subr.mxu0 %v241
      %699 = vmatpush1.msra.mxu0 %v240
      %700 = vmatprep.subr.mxu0 0.0
      %701 = vmatpush1.msra.mxu0 0.0
      %702 = vmatprep.subr.mxu0 0.0
      %703 = vmatpush1.msra.mxu0 0.0
      %704 = vmatprep.subr.mxu0 0.0
      %705 = vmatpush1.msra.mxu0 0.0
      %706 = vmatprep.subr.mxu0 0.0
      %707 = vmatpush1.msra.mxu0 0.0
      %708 = vmatprep.subr.mxu0 0.0
      %709 = vmatpush1.msra.mxu0 0.0
      %710 = vmatprep.subr.mxu0 0.0
      %711 = vmatpush1.msra.mxu0 0.0
      %712 = vmatprep.subr.mxu0 0.0
      %713 = vmatpush1.msra.mxu0 0.0
      %714 = vmatprep.subr.mxu0 0.0
      %715 = vmatpush1.msra.mxu0 0.0
      %716 = vmatprep.subr.mxu0 0.0
      %717 = vmatpush1.msra.mxu0 0.0
      %718 = vmatprep.subr.mxu0 0.0
      %719 = vmatpush1.msra.mxu0 0.0
      %720 = vmatprep.subr.mxu0 0.0
      %721 = vmatpush1.msra.mxu0 0.0
      %722 = vmatprep.subr.mxu0 0.0
      %723 = vmatpush1.msra.mxu0 0.0
      %724 = vmatprep.subr.mxu0 0.0
      %725 = vmatpush1.msra.mxu0 0.0
      %726 = vmatprep.subr.mxu0 0.0
      %727 = vmatpush1.msra.mxu0 0.0
      %728 = vmatprep.subr.mxu0 0.0
      %729 = vmatpush1.msra.mxu0 0.0
      %730 = vmatprep.subr.mxu0 0.0
      %731 = vmatpush1.msra.mxu0 0.0
      %732 = vmatprep.subr.mxu0 0.0
      %733 = vmatpush1.msra.mxu0 0.0
      %734 = vmatprep.subr.mxu0 0.0
      %735 = vmatpush1.msra.mxu0 0.0
      %736 = vmatprep.subr.mxu0 0.0
      %737 = vmatpush1.msra.mxu0 0.0
      %738 = vmatprep.subr.mxu0 0.0
      %739 = vmatpush1.msra.mxu0 0.0
      %740 = vmatprep.subr.mxu0 0.0
      %741 = vmatpush1.msra.mxu0 0.0
      %742 = vmatprep.subr.mxu0 0.0
      %743 = vmatpush1.msra.mxu0 0.0
      %744 = vmatprep.subr.mxu0 0.0
      %745 = vmatpush1.msra.mxu0 0.0
      %746 = vmatprep.subr.mxu0 0.0
      %747 = vmatpush1.msra.mxu0 0.0
      %748 = vmatprep.subr.mxu0 0.0
      %749 = vmatpush1.msra.mxu0 0.0
      %750 = vmatprep.subr.mxu0 0.0
      %751 = vmatpush1.msra.mxu0 0.0
      %752 = vmatprep.subr.mxu0 0.0
      %753 = vmatpush1.msra.mxu0 0.0
      %754 = vmatprep.subr.mxu0 0.0
      %755 = vmatpush1.msra.mxu0 0.0
      %756 = vmatprep.subr.mxu0 0.0
      %757 = vmatpush1.msra.mxu0 0.0
      %758 = vmatprep.subr.mxu0 0.0
      %759 = vmatpush1.msra.mxu0 0.0
      %760 = vmatprep.subr.mxu0 0.0
      %761 = vmatpush1.msra.mxu0 0.0
      %762 = vmatprep.mubr.f32.mxu0 0.0
      %763 = vmatmul.mubr.f32.gmra.mrb[0].mxu0 %v250
      %v764 = vpop.f32.mrb[0].mxu0
      %v765 = vadd.f32 0.0, %v764
      %v766 = vpop.f32.mrb[0].mxu0
      %v767 = vadd.f32 0.0, %v766
      %768 = vmatprep.mubr.f32.mxu0 0.0
      %769 = vmatmul.mubr.f32.gmra.mrb[0].mxu0 %v253
      %v770 = vpop.f32.mrb[0].mxu0
      %v771 = vadd.f32 0.0, %v770
      %v772 = vpop.f32.mrb[0].mxu0
      %v773 = vadd.f32 0.0, %v772
      %774 = vmatprep.mubr.f32.mxu0 0.0
      %775 = vmatmul.mubr.f32.gmra.mrb[0].mxu0 %v256
      %v776 = vpop.f32.mrb[0].mxu0
      %v777 = vadd.f32 0.0, %v776
      %v778 = vpop.f32.mrb[0].mxu0
      %v779 = vadd.f32 0.0, %v778
      %780 = vmatprep.mubr.f32.mxu0 0.0
      %781 = vmatmul.mubr.f32.gmra.mrb[0].mxu0 %v259
      %v782 = vpop.f32.mrb[0].mxu0
      %v783 = vadd.f32 0.0, %v782
      %v784 = vpop.f32.mrb[0].mxu0
      %v785 = vadd.f32 0.0, %v784
      %786 = vmatprep.mubr.f32.mxu0 0.0
      %787 = vmatmul.mubr.f32.gmra.mrb[0].mxu0 %v262
      %v788 = vpop.f32.mrb[0].mxu0
      %v789 = vadd.f32 0.0, %v788
      %v790 = vpop.f32.mrb[0].mxu0
      %v791 = vadd.f32 0.0, %v790
      %792 = vmatprep.mubr.f32.mxu0 0.0
      %793 = vmatmul.mubr.f32.gmra.mrb[0].mxu0 %v265
      %v794 = vpop.f32.mrb[0].mxu0
      %v795 = vadd.f32 0.0, %v794
      %v796 = vpop.f32.mrb[0].mxu0
      %v797 = vadd.f32 0.0, %v796
      %798 = vmatprep.mubr.f32.mxu0 0.0
      %799 = vmatmul.mubr.f32.gmra.mrb[0].mxu0 %v268
      %v800 = vpop.f32.mrb[0].mxu0
      %v801 = vadd.f32 0.0, %v800
      %v802 = vpop.f32.mrb[0].mxu0
      %v803 = vadd.f32 0.0, %v802
      %804 = vdwg.mxu0
      %805 = vmatprep.subr.mxu0 %v243
      %806 = vmatpush1.msra.mxu0 %v242
      %807 = vmatprep.subr.mxu0 0.0
      %808 = vmatpush1.msra.mxu0 0.0
      %809 = vmatprep.subr.mxu0 0.0
      %810 = vmatpush1.msra.mxu0 0.0
      %811 = vmatprep.subr.mxu0 0.0
      %812 = vmatpush1.msra.mxu0 0.0
      %813 = vmatprep.subr.mxu0 0.0
      %814 = vmatpush1.msra.mxu0 0.0
      %815 = vmatprep.subr.mxu0 0.0
      %816 = vmatpush1.msra.mxu0 0.0
      %817 = vmatprep.subr.mxu0 0.0
      %818 = vmatpush1.msra.mxu0 0.0
      %819 = vmatprep.subr.mxu0 0.0
      %820 = vmatpush1.msra.mxu0 0.0
      %821 = vmatprep.subr.mxu0 0.0
      %822 = vmatpush1.msra.mxu0 0.0
      %823 = vmatprep.subr.mxu0 0.0
      %824 = vmatpush1.msra.mxu0 0.0
      %825 = vmatprep.subr.mxu0 0.0
      %826 = vmatpush1.msra.mxu0 0.0
      %827 = vmatprep.subr.mxu0 0.0
      %828 = vmatpush1.msra.mxu0 0.0
      %829 = vmatprep.subr.mxu0 0.0
      %830 = vmatpush1.msra.mxu0 0.0
      %831 = vmatprep.subr.mxu0 0.0
      %832 = vmatpush1.msra.mxu0 0.0
      %833 = vmatprep.subr.mxu0 0.0
      %834 = vmatpush1.msra.mxu0 0.0
      %835 = vmatprep.subr.mxu0 0.0
      %836 = vmatpush1.msra.mxu0 0.0
      %837 = vmatprep.subr.mxu0 0.0
      %838 = vmatpush1.msra.mxu0 0.0
      %839 = vmatprep.subr.mxu0 0.0
      %840 = vmatpush1.msra.mxu0 0.0
      %841 = vmatprep.subr.mxu0 0.0
      %842 = vmatpush1.msra.mxu0 0.0
      %843 = vmatprep.subr.mxu0 0.0
      %844 = vmatpush1.msra.mxu0 0.0
      %845 = vmatprep.subr.mxu0 0.0
      %846 = vmatpush1.msra.mxu0 0.0
      %847 = vmatprep.subr.mxu0 0.0
      %848 = vmatpush1.msra.mxu0 0.0
      %849 = vmatprep.subr.mxu0 0.0
      %850 = vmatpush1.msra.mxu0 0.0
      %851 = vmatprep.subr.mxu0 0.0
      %852 = vmatpush1.msra.mxu0 0.0
      %853 = vmatprep.subr.mxu0 0.0
      %854 = vmatpush1.msra.mxu0 0.0
      %855 = vmatprep.subr.mxu0 0.0
      %856 = vmatpush1.msra.mxu0 0.0
      %857 = vmatprep.subr.mxu0 0.0
      %858 = vmatpush1.msra.mxu0 0.0
      %859 = vmatprep.subr.mxu0 0.0
      %860 = vmatpush1.msra.mxu0 0.0
      %861 = vmatprep.subr.mxu0 0.0
      %862 = vmatpush1.msra.mxu0 0.0
      %863 = vmatprep.subr.mxu0 0.0
      %864 = vmatpush1.msra.mxu0 0.0
      %865 = vmatprep.subr.mxu0 0.0
      %866 = vmatpush1.msra.mxu0 0.0
      %867 = vmatprep.subr.mxu0 0.0
      %868 = vmatpush1.msra.mxu0 0.0
      %869 = vmatprep.mubr.f32.mxu0 0.0
      %870 = vmatmul.mubr.f32.gmra.mrb[0].mxu0 %v250
      %v871 = vpop.f32.mrb[0].mxu0
      %v872 = vadd.f32 0.0, %v871
      %v873 = vpop.f32.mrb[0].mxu0
      %v874 = vadd.f32 0.0, %v873
      %875 = vmatprep.mubr.f32.mxu0 0.0
      %876 = vmatmul.mubr.f32.gmra.mrb[0].mxu0 %v253
      %v877 = vpop.f32.mrb[0].mxu0
      %v878 = vadd.f32 0.0, %v877
      %v879 = vpop.f32.mrb[0].mxu0
      %v880 = vadd.f32 0.0, %v879
      %881 = vmatprep.mubr.f32.mxu0 0.0
      %882 = vmatmul.mubr.f32.gmra.mrb[0].mxu0 %v256
      %v883 = vpop.f32.mrb[0].mxu0
      %v884 = vadd.f32 0.0, %v883
      %v885 = vpop.f32.mrb[0].mxu0
      %v886 = vadd.f32 0.0, %v885
      %887 = vmatprep.mubr.f32.mxu0 0.0
      %888 = vmatmul.mubr.f32.gmra.mrb[0].mxu0 %v259
      %v889 = vpop.f32.mrb[0].mxu0
      %v890 = vadd.f32 0.0, %v889
      %v891 = vpop.f32.mrb[0].mxu0
      %v892 = vadd.f32 0.0, %v891
      %893 = vmatprep.mubr.f32.mxu0 0.0
      %894 = vmatmul.mubr.f32.gmra.mrb[0].mxu0 %v262
      %v895 = vpop.f32.mrb[0].mxu0
      %v896 = vadd.f32 0.0, %v895
      %v897 = vpop.f32.mrb[0].mxu0
      %v898 = vadd.f32 0.0, %v897
      %899 = vmatprep.mubr.f32.mxu0 0.0
      %900 = vmatmul.mubr.f32.gmra.mrb[0].mxu0 %v265
      %v901 = vpop.f32.mrb[0].mxu0
      %v902 = vadd.f32 0.0, %v901
      %v903 = vpop.f32.mrb[0].mxu0
      %v904 = vadd.f32 0.0, %v903
      %905 = vmatprep.mubr.f32.mxu0 0.0
      %906 = vmatmul.mubr.f32.gmra.mrb[0].mxu0 %v268
      %v907 = vpop.f32.mrb[0].mxu0
      %v908 = vadd.f32 0.0, %v907
      %v909 = vpop.f32.mrb[0].mxu0
      %v910 = vadd.f32 0.0, %v909
      %911 = vdwg.mxu0
      %912 = vmatprep.subr.mxu0 %v245
      %913 = vmatpush1.msra.mxu0 %v244
      %914 = vmatprep.subr.mxu0 0.0
      %915 = vmatpush1.msra.mxu0 0.0
      %916 = vmatprep.subr.mxu0 0.0
      %917 = vmatpush1.msra.mxu0 0.0
      %918 = vmatprep.subr.mxu0 0.0
      %919 = vmatpush1.msra.mxu0 0.0
      %920 = vmatprep.subr.mxu0 0.0
      %921 = vmatpush1.msra.mxu0 0.0
      %922 = vmatprep.subr.mxu0 0.0
      %923 = vmatpush1.msra.mxu0 0.0
      %924 = vmatprep.subr.mxu0 0.0
      %925 = vmatpush1.msra.mxu0 0.0
      %926 = vmatprep.subr.mxu0 0.0
      %927 = vmatpush1.msra.mxu0 0.0
      %928 = vmatprep.subr.mxu0 0.0
      %929 = vmatpush1.msra.mxu0 0.0
      %930 = vmatprep.subr.mxu0 0.0
      %931 = vmatpush1.msra.mxu0 0.0
      %932 = vmatprep.subr.mxu0 0.0
      %933 = vmatpush1.msra.mxu0 0.0
      %934 = vmatprep.subr.mxu0 0.0
      %935 = vmatpush1.msra.mxu0 0.0
      %936 = vmatprep.subr.mxu0 0.0
      %937 = vmatpush1.msra.mxu0 0.0
      %938 = vmatprep.subr.mxu0 0.0
      %939 = vmatpush1.msra.mxu0 0.0
      %940 = vmatprep.subr.mxu0 0.0
      %941 = vmatpush1.msra.mxu0 0.0
      %942 = vmatprep.subr.mxu0 0.0
      %943 = vmatpush1.msra.mxu0 0.0
      %944 = vmatprep.subr.mxu0 0.0
      %945 = vmatpush1.msra.mxu0 0.0
      %946 = vmatprep.subr.mxu0 0.0
      %947 = vmatpush1.msra.mxu0 0.0
      %948 = vmatprep.subr.mxu0 0.0
      %949 = vmatpush1.msra.mxu0 0.0
      %950 = vmatprep.subr.mxu0 0.0
      %951 = vmatpush1.msra.mxu0 0.0
      %952 = vmatprep.subr.mxu0 0.0
      %953 = vmatpush1.msra.mxu0 0.0
      %954 = vmatprep.subr.mxu0 0.0
      %955 = vmatpush1.msra.mxu0 0.0
      %956 = vmatprep.subr.mxu0 0.0
      %957 = vmatpush1.msra.mxu0 0.0
      %958 = vmatprep.subr.mxu0 0.0
      %959 = vmatpush1.msra.mxu0 0.0
      %960 = vmatprep.subr.mxu0 0.0
      %961 = vmatpush1.msra.mxu0 0.0
      %962 = vmatprep.subr.mxu0 0.0
      %963 = vmatpush1.msra.mxu0 0.0
      %964 = vmatprep.subr.mxu0 0.0
      %965 = vmatpush1.msra.mxu0 0.0
      %966 = vmatprep.subr.mxu0 0.0
      %967 = vmatpush1.msra.mxu0 0.0
      %968 = vmatprep.subr.mxu0 0.0
      %969 = vmatpush1.msra.mxu0 0.0
      %970 = vmatprep.subr.mxu0 0.0
      %971 = vmatpush1.msra.mxu0 0.0
      %972 = vmatprep.subr.mxu0 0.0
      %973 = vmatpush1.msra.mxu0 0.0
      %974 = vmatprep.subr.mxu0 0.0
      %975 = vmatpush1.msra.mxu0 0.0
      %976 = vmatprep.mubr.f32.mxu0 0.0
      %977 = vmatmul.mubr.f32.gmra.mrb[0].mxu0 %v250
      %v978 = vpop.f32.mrb[0].mxu0
      %v979 = vadd.f32 0.0, %v978
      %v980 = vpop.f32.mrb[0].mxu0
      %v981 = vadd.f32 0.0, %v980
      %982 = vmatprep.mubr.f32.mxu0 0.0
      %983 = vmatmul.mubr.f32.gmra.mrb[0].mxu0 %v253
      %v984 = vpop.f32.mrb[0].mxu0
      %v985 = vadd.f32 0.0, %v984
      %v986 = vpop.f32.mrb[0].mxu0
      %v987 = vadd.f32 0.0, %v986
      %988 = vmatprep.mubr.f32.mxu0 0.0
      %989 = vmatmul.mubr.f32.gmra.mrb[0].mxu0 %v256
      %v990 = vpop.f32.mrb[0].mxu0
      %v991 = vadd.f32 0.0, %v990
      %v992 = vpop.f32.mrb[0].mxu0
      %v993 = vadd.f32 0.0, %v992
      %994 = vmatprep.mubr.f32.mxu0 0.0
      %995 = vmatmul.mubr.f32.gmra.mrb[0].mxu0 %v259
      %v996 = vpop.f32.mrb[0].mxu0
      %v997 = vadd.f32 0.0, %v996
      %v998 = vpop.f32.mrb[0].mxu0
      %v999 = vadd.f32 0.0, %v998
      %1000 = vmatprep.mubr.f32.mxu0 0.0
      %1001 = vmatmul.mubr.f32.gmra.mrb[0].mxu0 %v262
      %v1002 = vpop.f32.mrb[0].mxu0
      %v1003 = vadd.f32 0.0, %v1002
      %v1004 = vpop.f32.mrb[0].mxu0
      %v1005 = vadd.f32 0.0, %v1004
      %1006 = vmatprep.mubr.f32.mxu0 0.0
      %1007 = vmatmul.mubr.f32.gmra.mrb[0].mxu0 %v265
      %v1008 = vpop.f32.mrb[0].mxu0
      %v1009 = vadd.f32 0.0, %v1008
      %v1010 = vpop.f32.mrb[0].mxu0
      %v1011 = vadd.f32 0.0, %v1010
      %1012 = vmatprep.mubr.f32.mxu0 0.0
      %1013 = vmatmul.mubr.f32.gmra.mrb[0].mxu0 %v268
      %v1014 = vpop.f32.mrb[0].mxu0
      %v1015 = vadd.f32 0.0, %v1014
      %v1016 = vpop.f32.mrb[0].mxu0
      %v1017 = vadd.f32 0.0, %v1016
      %1018 = vdwg.mxu0
      %1019 = vmatprep.subr.mxu0 %v247
      %1020 = vmatpush1.msra.mxu0 %v246
      %1021 = vmatprep.subr.mxu0 0.0
      %1022 = vmatpush1.msra.mxu0 0.0
      %1023 = vmatprep.subr.mxu0 0.0
      %1024 = vmatpush1.msra.mxu0 0.0
      %1025 = vmatprep.subr.mxu0 0.0
      %1026 = vmatpush1.msra.mxu0 0.0
      %1027 = vmatprep.subr.mxu0 0.0
      %1028 = vmatpush1.msra.mxu0 0.0
      %1029 = vmatprep.subr.mxu0 0.0
      %1030 = vmatpush1.msra.mxu0 0.0
      %1031 = vmatprep.subr.mxu0 0.0
      %1032 = vmatpush1.msra.mxu0 0.0
      %1033 = vmatprep.subr.mxu0 0.0
      %1034 = vmatpush1.msra.mxu0 0.0
      %1035 = vmatprep.subr.mxu0 0.0
      %1036 = vmatpush1.msra.mxu0 0.0
      %1037 = vmatprep.subr.mxu0 0.0
      %1038 = vmatpush1.msra.mxu0 0.0
      %1039 = vmatprep.subr.mxu0 0.0
      %1040 = vmatpush1.msra.mxu0 0.0
      %1041 = vmatprep.subr.mxu0 0.0
      %1042 = vmatpush1.msra.mxu0 0.0
      %1043 = vmatprep.subr.mxu0 0.0
      %1044 = vmatpush1.msra.mxu0 0.0
      %1045 = vmatprep.subr.mxu0 0.0
      %1046 = vmatpush1.msra.mxu0 0.0
      %1047 = vmatprep.subr.mxu0 0.0
      %1048 = vmatpush1.msra.mxu0 0.0
      %1049 = vmatprep.subr.mxu0 0.0
      %1050 = vmatpush1.msra.mxu0 0.0
      %1051 = vmatprep.subr.mxu0 0.0
      %1052 = vmatpush1.msra.mxu0 0.0
      %1053 = vmatprep.subr.mxu0 0.0
      %1054 = vmatpush1.msra.mxu0 0.0
      %1055 = vmatprep.subr.mxu0 0.0
      %1056 = vmatpush1.msra.mxu0 0.0
      %1057 = vmatprep.subr.mxu0 0.0
      %1058 = vmatpush1.msra.mxu0 0.0
      %1059 = vmatprep.subr.mxu0 0.0
      %1060 = vmatpush1.msra.mxu0 0.0
      %1061 = vmatprep.subr.mxu0 0.0
      %1062 = vmatpush1.msra.mxu0 0.0
      %1063 = vmatprep.subr.mxu0 0.0
      %1064 = vmatpush1.msra.mxu0 0.0
      %1065 = vmatprep.subr.mxu0 0.0
      %1066 = vmatpush1.msra.mxu0 0.0
      %1067 = vmatprep.subr.mxu0 0.0
      %1068 = vmatpush1.msra.mxu0 0.0
      %1069 = vmatprep.subr.mxu0 0.0
      %1070 = vmatpush1.msra.mxu0 0.0
      %1071 = vmatprep.subr.mxu0 0.0
      %1072 = vmatpush1.msra.mxu0 0.0
      %1073 = vmatprep.subr.mxu0 0.0
      %1074 = vmatpush1.msra.mxu0 0.0
      %1075 = vmatprep.subr.mxu0 0.0
      %1076 = vmatpush1.msra.mxu0 0.0
      %1077 = vmatprep.subr.mxu0 0.0
      %1078 = vmatpush1.msra.mxu0 0.0
      %1079 = vmatprep.subr.mxu0 0.0
      %1080 = vmatpush1.msra.mxu0 0.0
      %1081 = vmatprep.subr.mxu0 0.0
      %1082 = vmatpush1.msra.mxu0 0.0
      %1083 = vmatprep.mubr.f32.mxu0 0.0
      %1084 = vmatmul.mubr.f32.gmra.mrb[0].mxu0 %v250
      %v1085 = vpop.f32.mrb[0].mxu0
      %v1086 = vadd.f32 0.0, %v1085
      %v1087 = vpop.f32.mrb[0].mxu0
      %v1088 = vadd.f32 0.0, %v1087
      %1089 = vmatprep.mubr.f32.mxu0 0.0
      %1090 = vmatmul.mubr.f32.gmra.mrb[0].mxu0 %v253
      %v1091 = vpop.f32.mrb[0].mxu0
      %v1092 = vadd.f32 0.0, %v1091
      %v1093 = vpop.f32.mrb[0].mxu0
      %v1094 = vadd.f32 0.0, %v1093
      %1095 = vmatprep.mubr.f32.mxu0 0.0
      %1096 = vmatmul.mubr.f32.gmra.mrb[0].mxu0 %v256
      %v1097 = vpop.f32.mrb[0].mxu0
      %v1098 = vadd.f32 0.0, %v1097
      %v1099 = vpop.f32.mrb[0].mxu0
      %v1100 = vadd.f32 0.0, %v1099
      %1101 = vmatprep.mubr.f32.mxu0 0.0
      %1102 = vmatmul.mubr.f32.gmra.mrb[0].mxu0 %v259
      %v1103 = vpop.f32.mrb[0].mxu0
      %v1104 = vadd.f32 0.0, %v1103
      %v1105 = vpop.f32.mrb[0].mxu0
      %v1106 = vadd.f32 0.0, %v1105
      %1107 = vmatprep.mubr.f32.mxu0 0.0
      %1108 = vmatmul.mubr.f32.gmra.mrb[0].mxu0 %v262
      %v1109 = vpop.f32.mrb[0].mxu0
      %v1110 = vadd.f32 0.0, %v1109
      %v1111 = vpop.f32.mrb[0].mxu0
      %v1112 = vadd.f32 0.0, %v1111
      %1113 = vmatprep.mubr.f32.mxu0 0.0
      %1114 = vmatmul.mubr.f32.gmra.mrb[0].mxu0 %v265
      %v1115 = vpop.f32.mrb[0].mxu0
      %v1116 = vadd.f32 0.0, %v1115
      %v1117 = vpop.f32.mrb[0].mxu0
      %v1118 = vadd.f32 0.0, %v1117
      %1119 = vmatprep.mubr.f32.mxu0 0.0
      %1120 = vmatmul.mubr.f32.gmra.mrb[0].mxu0 %v268
      %v1121 = vpop.f32.mrb[0].mxu0
      %v1122 = vadd.f32 0.0, %v1121
      %v1123 = vpop.f32.mrb[0].mxu0
      %v1124 = vadd.f32 0.0, %v1123
      %1125 = vdwg.mxu0
      %v1126 = vmax.f32 %v337, 0.0
      %v1127 = vmax.f32 %v339, 0.0
      %v1128 = vmax.f32 %v444, 0.0
      %v1129 = vmax.f32 %v446, 0.0
      %v1130 = vmax.f32 %v551, 0.0
      %v1131 = vmax.f32 %v553, 0.0
      %v1132 = vmax.f32 %v658, 0.0
      %v1133 = vmax.f32 %v660, 0.0
      %v1134 = vmax.f32 %v765, 0.0
      %v1135 = vmax.f32 %v767, 0.0
      %v1136 = vmax.f32 %v872, 0.0
      %v1137 = vmax.f32 %v874, 0.0
      %v1138 = vmax.f32 %v979, 0.0
      %v1139 = vmax.f32 %v981, 0.0
      %v1140 = vmax.f32 %v1086, 0.0
      %v1141 = vmax.f32 %v1088, 0.0
      %v1142 = vmax.f32 %v343, 0.0
      %v1143 = vmax.f32 %v345, 0.0
      %v1144 = vmax.f32 %v450, 0.0
      %v1145 = vmax.f32 %v452, 0.0
      %v1146 = vmax.f32 %v557, 0.0
      %v1147 = vmax.f32 %v559, 0.0
      %v1148 = vmax.f32 %v664, 0.0
      %v1149 = vmax.f32 %v666, 0.0
      %v1150 = vmax.f32 %v771, 0.0
      %v1151 = vmax.f32 %v773, 0.0
      %v1152 = vmax.f32 %v878, 0.0
      %v1153 = vmax.f32 %v880, 0.0
      %v1154 = vmax.f32 %v985, 0.0
      %v1155 = vmax.f32 %v987, 0.0
      %v1156 = vmax.f32 %v1092, 0.0
      %v1157 = vmax.f32 %v1094, 0.0
      %v1158 = vmax.f32 %v349, 0.0
      %v1159 = vmax.f32 %v351, 0.0
      %v1160 = vmax.f32 %v456, 0.0
      %v1161 = vmax.f32 %v458, 0.0
      %v1162 = vmax.f32 %v563, 0.0
      %v1163 = vmax.f32 %v565, 0.0
      %v1164 = vmax.f32 %v670, 0.0
      %v1165 = vmax.f32 %v672, 0.0
      %v1166 = vmax.f32 %v777, 0.0
      %v1167 = vmax.f32 %v779, 0.0
      %v1168 = vmax.f32 %v884, 0.0
      %v1169 = vmax.f32 %v886, 0.0
      %v1170 = vmax.f32 %v991, 0.0
      %v1171 = vmax.f32 %v993, 0.0
      %v1172 = vmax.f32 %v1098, 0.0
      %v1173 = vmax.f32 %v1100, 0.0
      %v1174 = vmax.f32 %v355, 0.0
      %v1175 = vmax.f32 %v357, 0.0
      %v1176 = vmax.f32 %v462, 0.0
      %v1177 = vmax.f32 %v464, 0.0
      %v1178 = vmax.f32 %v569, 0.0
      %v1179 = vmax.f32 %v571, 0.0
      %v1180 = vmax.f32 %v676, 0.0
      %v1181 = vmax.f32 %v678, 0.0
      %v1182 = vmax.f32 %v783, 0.0
      %v1183 = vmax.f32 %v785, 0.0
      %v1184 = vmax.f32 %v890, 0.0
      %v1185 = vmax.f32 %v892, 0.0
      %v1186 = vmax.f32 %v997, 0.0
      %v1187 = vmax.f32 %v999, 0.0
      %v1188 = vmax.f32 %v1104, 0.0
      %v1189 = vmax.f32 %v1106, 0.0
      %v1190 = vmax.f32 %v361, 0.0
      %v1191 = vmax.f32 %v363, 0.0
      %v1192 = vmax.f32 %v468, 0.0
      %v1193 = vmax.f32 %v470, 0.0
      %v1194 = vmax.f32 %v575, 0.0
      %v1195 = vmax.f32 %v577, 0.0
      %v1196 = vmax.f32 %v682, 0.0
      %v1197 = vmax.f32 %v684, 0.0
      %v1198 = vmax.f32 %v789, 0.0
      %v1199 = vmax.f32 %v791, 0.0
      %v1200 = vmax.f32 %v896, 0.0
      %v1201 = vmax.f32 %v898, 0.0
      %v1202 = vmax.f32 %v1003, 0.0
      %v1203 = vmax.f32 %v1005, 0.0
      %v1204 = vmax.f32 %v1110, 0.0
      %v1205 = vmax.f32 %v1112, 0.0
      %v1206 = vmax.f32 %v367, 0.0
      %v1207 = vmax.f32 %v369, 0.0
      %v1208 = vmax.f32 %v474, 0.0
      %v1209 = vmax.f32 %v476, 0.0
      %v1210 = vmax.f32 %v581, 0.0
      %v1211 = vmax.f32 %v583, 0.0
      %v1212 = vmax.f32 %v688, 0.0
      %v1213 = vmax.f32 %v690, 0.0
      %v1214 = vmax.f32 %v795, 0.0
      %v1215 = vmax.f32 %v797, 0.0
      %v1216 = vmax.f32 %v902, 0.0
      %v1217 = vmax.f32 %v904, 0.0
      %v1218 = vmax.f32 %v1009, 0.0
      %v1219 = vmax.f32 %v1011, 0.0
      %v1220 = vmax.f32 %v1116, 0.0
      %v1221 = vmax.f32 %v1118, 0.0
      %v1222 = vmax.f32 %v373, 0.0
      %v1223 = vmax.f32 %v375, 0.0
      %v1224 = vmax.f32 %v480, 0.0
      %v1225 = vmax.f32 %v482, 0.0
      %v1226 = vmax.f32 %v587, 0.0
      %v1227 = vmax.f32 %v589, 0.0
      %v1228 = vmax.f32 %v694, 0.0
      %v1229 = vmax.f32 %v696, 0.0
      %v1230 = vmax.f32 %v801, 0.0
      %v1231 = vmax.f32 %v803, 0.0
      %v1232 = vmax.f32 %v908, 0.0
      %v1233 = vmax.f32 %v910, 0.0
      %v1234 = vmax.f32 %v1015, 0.0
      %v1235 = vmax.f32 %v1017, 0.0
      %v1236 = vmax.f32 %v1122, 0.0
      %v1237 = vmax.f32 %v1124, 0.0
      %v1238 = vld [vmem:[%s2] sm:$0xff]
      %v1239 = vld [vmem:[%s2 + $0x8] sm:$0xff]
      %vm1240 = vcmask 457728
      %v1242 = vsel %vm1240, %v1238, 0
      %v1245 = vsel %vm1240, %v1239, 0
      %1247 = vmatprep.subr.mxu0 %v1127
      %1248 = vmatpush1.msra.mxu0 %v1126
      %1249 = vmatprep.subr.mxu0 %v1143
      %1250 = vmatpush1.msra.mxu0 %v1142
      %1251 = vmatprep.subr.mxu0 %v1159
      %1252 = vmatpush1.msra.mxu0 %v1158
      %1253 = vmatprep.subr.mxu0 %v1175
      %1254 = vmatpush1.msra.mxu0 %v1174
      %1255 = vmatprep.subr.mxu0 %v1191
      %1256 = vmatpush1.msra.mxu0 %v1190
      %1257 = vmatprep.subr.mxu0 %v1207
      %1258 = vmatpush1.msra.mxu0 %v1206
      %1259 = vmatprep.subr.mxu0 %v1223
      %1260 = vmatpush1.msra.mxu0 %v1222
      %1261 = vmatprep.subr.mxu0 0.0
      %1262 = vmatpush1.msra.mxu0 0.0
      %1263 = vmatprep.subr.mxu0 0.0
      %1264 = vmatpush1.msra.mxu0 0.0
      %1265 = vmatprep.subr.mxu0 0.0
      %1266 = vmatpush1.msra.mxu0 0.0
      %1267 = vmatprep.subr.mxu0 0.0
      %1268 = vmatpush1.msra.mxu0 0.0
      %1269 = vmatprep.subr.mxu0 0.0
      %1270 = vmatpush1.msra.mxu0 0.0
      %1271 = vmatprep.subr.mxu0 0.0
      %1272 = vmatpush1.msra.mxu0 0.0
      %1273 = vmatprep.subr.mxu0 0.0
      %1274 = vmatpush1.msra.mxu0 0.0
      %1275 = vmatprep.subr.mxu0 0.0
      %1276 = vmatpush1.msra.mxu0 0.0
      %1277 = vmatprep.subr.mxu0 0.0
      %1278 = vmatpush1.msra.mxu0 0.0
      %1279 = vmatprep.subr.mxu0 0.0
      %1280 = vmatpush1.msra.mxu0 0.0
      %1281 = vmatprep.subr.mxu0 0.0
      %1282 = vmatpush1.msra.mxu0 0.0
      %1283 = vmatprep.subr.mxu0 0.0
      %1284 = vmatpush1.msra.mxu0 0.0
      %1285 = vmatprep.subr.mxu0 0.0
      %1286 = vmatpush1.msra.mxu0 0.0
      %1287 = vmatprep.subr.mxu0 0.0
      %1288 = vmatpush1.msra.mxu0 0.0
      %1289 = vmatprep.subr.mxu0 0.0
      %1290 = vmatpush1.msra.mxu0 0.0
      %1291 = vmatprep.subr.mxu0 0.0
      %1292 = vmatpush1.msra.mxu0 0.0
      %1293 = vmatprep.subr.mxu0 0.0
      %1294 = vmatpush1.msra.mxu0 0.0
      %1295 = vmatprep.subr.mxu0 0.0
      %1296 = vmatpush1.msra.mxu0 0.0
      %1297 = vmatprep.subr.mxu0 0.0
      %1298 = vmatpush1.msra.mxu0 0.0
      %1299 = vmatprep.subr.mxu0 0.0
      %1300 = vmatpush1.msra.mxu0 0.0
      %1301 = vmatprep.subr.mxu0 0.0
      %1302 = vmatpush1.msra.mxu0 0.0
      %1303 = vmatprep.subr.mxu0 0.0
      %1304 = vmatpush1.msra.mxu0 0.0
      %1305 = vmatprep.subr.mxu0 0.0
      %1306 = vmatpush1.msra.mxu0 0.0
      %1307 = vmatprep.subr.mxu0 0.0
      %1308 = vmatpush1.msra.mxu0 0.0
      %1309 = vmatprep.subr.mxu0 0.0
      %1310 = vmatpush1.msra.mxu0 0.0
      %1311 = vmatprep.mubr.f32.mxu0 0.0
      %1312 = vmatmul.mubr.f32.gmra.mrb[0].mxu0 %v1242
      %v1313 = vpop.f32.mrb[0].mxu0
      %v1314 = vadd.f32 0.0, %v1313
      %v1315 = vpop.f32.mrb[0].mxu0
      %v1316 = vadd.f32 0.0, %v1315
      %1317 = vmatprep.mubr.f32.mxu0 0.0
      %1318 = vmatmul.mubr.f32.gmra.mrb[0].mxu0 %v1245
      %v1319 = vpop.f32.mrb[0].mxu0
      %v1320 = vadd.f32 0.0, %v1319
      %v1321 = vpop.f32.mrb[0].mxu0
      %v1322 = vadd.f32 0.0, %v1321
      %1323 = vdwg.mxu0
      %1324 = vmatprep.subr.mxu0 %v1129
      %1325 = vmatpush1.msra.mxu0 %v1128
      %1326 = vmatprep.subr.mxu0 %v1145
      %1327 = vmatpush1.msra.mxu0 %v1144
      %1328 = vmatprep.subr.mxu0 %v1161
      %1329 = vmatpush1.msra.mxu0 %v1160
      %1330 = vmatprep.subr.mxu0 %v1177
      %1331 = vmatpush1.msra.mxu0 %v1176
      %1332 = vmatprep.subr.mxu0 %v1193
      %1333 = vmatpush1.msra.mxu0 %v1192
      %1334 = vmatprep.subr.mxu0 %v1209
      %1335 = vmatpush1.msra.mxu0 %v1208
      %1336 = vmatprep.subr.mxu0 %v1225
      %1337 = vmatpush1.msra.mxu0 %v1224
      %1338 = vmatprep.subr.mxu0 0.0
      %1339 = vmatpush1.msra.mxu0 0.0
      %1340 = vmatprep.subr.mxu0 0.0
      %1341 = vmatpush1.msra.mxu0 0.0
      %1342 = vmatprep.subr.mxu0 0.0
      %1343 = vmatpush1.msra.mxu0 0.0
      %1344 = vmatprep.subr.mxu0 0.0
      %1345 = vmatpush1.msra.mxu0 0.0
      %1346 = vmatprep.subr.mxu0 0.0
      %1347 = vmatpush1.msra.mxu0 0.0
      %1348 = vmatprep.subr.mxu0 0.0
      %1349 = vmatpush1.msra.mxu0 0.0
      %1350 = vmatprep.subr.mxu0 0.0
      %1351 = vmatpush1.msra.mxu0 0.0
      %1352 = vmatprep.subr.mxu0 0.0
      %1353 = vmatpush1.msra.mxu0 0.0
      %1354 = vmatprep.subr.mxu0 0.0
      %1355 = vmatpush1.msra.mxu0 0.0
      %1356 = vmatprep.subr.mxu0 0.0
      %1357 = vmatpush1.msra.mxu0 0.0
      %1358 = vmatprep.subr.mxu0 0.0
      %1359 = vmatpush1.msra.mxu0 0.0
      %1360 = vmatprep.subr.mxu0 0.0
      %1361 = vmatpush1.msra.mxu0 0.0
      %1362 = vmatprep.subr.mxu0 0.0
      %1363 = vmatpush1.msra.mxu0 0.0
      %1364 = vmatprep.subr.mxu0 0.0
      %1365 = vmatpush1.msra.mxu0 0.0
      %1366 = vmatprep.subr.mxu0 0.0
      %1367 = vmatpush1.msra.mxu0 0.0
      %1368 = vmatprep.subr.mxu0 0.0
      %1369 = vmatpush1.msra.mxu0 0.0
      %1370 = vmatprep.subr.mxu0 0.0
      %1371 = vmatpush1.msra.mxu0 0.0
      %1372 = vmatprep.subr.mxu0 0.0
      %1373 = vmatpush1.msra.mxu0 0.0
      %1374 = vmatprep.subr.mxu0 0.0
      %1375 = vmatpush1.msra.mxu0 0.0
      %1376 = vmatprep.subr.mxu0 0.0
      %1377 = vmatpush1.msra.mxu0 0.0
      %1378 = vmatprep.subr.mxu0 0.0
      %1379 = vmatpush1.msra.mxu0 0.0
      %1380 = vmatprep.subr.mxu0 0.0
      %1381 = vmatpush1.msra.mxu0 0.0
      %1382 = vmatprep.subr.mxu0 0.0
      %1383 = vmatpush1.msra.mxu0 0.0
      %1384 = vmatprep.subr.mxu0 0.0
      %1385 = vmatpush1.msra.mxu0 0.0
      %1386 = vmatprep.subr.mxu0 0.0
      %1387 = vmatpush1.msra.mxu0 0.0
      %1388 = vmatprep.mubr.f32.mxu0 0.0
      %1389 = vmatmul.mubr.f32.gmra.mrb[0].mxu0 %v1242
      %v1390 = vpop.f32.mrb[0].mxu0
      %v1391 = vadd.f32 0.0, %v1390
      %v1392 = vpop.f32.mrb[0].mxu0
      %v1393 = vadd.f32 0.0, %v1392
      %1394 = vmatprep.mubr.f32.mxu0 0.0
      %1395 = vmatmul.mubr.f32.gmra.mrb[0].mxu0 %v1245
      %v1396 = vpop.f32.mrb[0].mxu0
      %v1397 = vadd.f32 0.0, %v1396
      %v1398 = vpop.f32.mrb[0].mxu0
      %v1399 = vadd.f32 0.0, %v1398
      %1400 = vdwg.mxu0
      %1401 = vmatprep.subr.mxu0 %v1131
      %1402 = vmatpush1.msra.mxu0 %v1130
      %1403 = vmatprep.subr.mxu0 %v1147
      %1404 = vmatpush1.msra.mxu0 %v1146
      %1405 = vmatprep.subr.mxu0 %v1163
      %1406 = vmatpush1.msra.mxu0 %v1162
      %1407 = vmatprep.subr.mxu0 %v1179
      %1408 = vmatpush1.msra.mxu0 %v1178
      %1409 = vmatprep.subr.mxu0 %v1195
      %1410 = vmatpush1.msra.mxu0 %v1194
      %1411 = vmatprep.subr.mxu0 %v1211
      %1412 = vmatpush1.msra.mxu0 %v1210
      %1413 = vmatprep.subr.mxu0 %v1227
      %1414 = vmatpush1.msra.mxu0 %v1226
      %1415 = vmatprep.subr.mxu0 0.0
      %1416 = vmatpush1.msra.mxu0 0.0
      %1417 = vmatprep.subr.mxu0 0.0
      %1418 = vmatpush1.msra.mxu0 0.0
      %1419 = vmatprep.subr.mxu0 0.0
      %1420 = vmatpush1.msra.mxu0 0.0
      %1421 = vmatprep.subr.mxu0 0.0
      %1422 = vmatpush1.msra.mxu0 0.0
      %1423 = vmatprep.subr.mxu0 0.0
      %1424 = vmatpush1.msra.mxu0 0.0
      %1425 = vmatprep.subr.mxu0 0.0
      %1426 = vmatpush1.msra.mxu0 0.0
      %1427 = vmatprep.subr.mxu0 0.0
      %1428 = vmatpush1.msra.mxu0 0.0
      %1429 = vmatprep.subr.mxu0 0.0
      %1430 = vmatpush1.msra.mxu0 0.0
      %1431 = vmatprep.subr.mxu0 0.0
      %1432 = vmatpush1.msra.mxu0 0.0
      %1433 = vmatprep.subr.mxu0 0.0
      %1434 = vmatpush1.msra.mxu0 0.0
      %1435 = vmatprep.subr.mxu0 0.0
      %1436 = vmatpush1.msra.mxu0 0.0
      %1437 = vmatprep.subr.mxu0 0.0
      %1438 = vmatpush1.msra.mxu0 0.0
      %1439 = vmatprep.subr.mxu0 0.0
      %1440 = vmatpush1.msra.mxu0 0.0
      %1441 = vmatprep.subr.mxu0 0.0
      %1442 = vmatpush1.msra.mxu0 0.0
      %1443 = vmatprep.subr.mxu0 0.0
      %1444 = vmatpush1.msra.mxu0 0.0
      %1445 = vmatprep.subr.mxu0 0.0
      %1446 = vmatpush1.msra.mxu0 0.0
      %1447 = vmatprep.subr.mxu0 0.0
      %1448 = vmatpush1.msra.mxu0 0.0
      %1449 = vmatprep.subr.mxu0 0.0
      %1450 = vmatpush1.msra.mxu0 0.0
      %1451 = vmatprep.subr.mxu0 0.0
      %1452 = vmatpush1.msra.mxu0 0.0
      %1453 = vmatprep.subr.mxu0 0.0
      %1454 = vmatpush1.msra.mxu0 0.0
      %1455 = vmatprep.subr.mxu0 0.0
      %1456 = vmatpush1.msra.mxu0 0.0
      %1457 = vmatprep.subr.mxu0 0.0
      %1458 = vmatpush1.msra.mxu0 0.0
      %1459 = vmatprep.subr.mxu0 0.0
      %1460 = vmatpush1.msra.mxu0 0.0
      %1461 = vmatprep.subr.mxu0 0.0
      %1462 = vmatpush1.msra.mxu0 0.0
      %1463 = vmatprep.subr.mxu0 0.0
      %1464 = vmatpush1.msra.mxu0 0.0
      %1465 = vmatprep.mubr.f32.mxu0 0.0
      %1466 = vmatmul.mubr.f32.gmra.mrb[0].mxu0 %v1242
      %v1467 = vpop.f32.mrb[0].mxu0
      %v1468 = vadd.f32 0.0, %v1467
      %v1469 = vpop.f32.mrb[0].mxu0
      %v1470 = vadd.f32 0.0, %v1469
      %1471 = vmatprep.mubr.f32.mxu0 0.0
      %1472 = vmatmul.mubr.f32.gmra.mrb[0].mxu0 %v1245
      %v1473 = vpop.f32.mrb[0].mxu0
      %v1474 = vadd.f32 0.0, %v1473
      %v1475 = vpop.f32.mrb[0].mxu0
      %v1476 = vadd.f32 0.0, %v1475
      %1477 = vdwg.mxu0
      %1478 = vmatprep.subr.mxu0 %v1133
      %1479 = vmatpush1.msra.mxu0 %v1132
      %1480 = vmatprep.subr.mxu0 %v1149
      %1481 = vmatpush1.msra.mxu0 %v1148
      %1482 = vmatprep.subr.mxu0 %v1165
      %1483 = vmatpush1.msra.mxu0 %v1164
      %1484 = vmatprep.subr.mxu0 %v1181
      %1485 = vmatpush1.msra.mxu0 %v1180
      %1486 = vmatprep.subr.mxu0 %v1197
      %1487 = vmatpush1.msra.mxu0 %v1196
      %1488 = vmatprep.subr.mxu0 %v1213
      %1489 = vmatpush1.msra.mxu0 %v1212
      %1490 = vmatprep.subr.mxu0 %v1229
      %1491 = vmatpush1.msra.mxu0 %v1228
      %1492 = vmatprep.subr.mxu0 0.0
      %1493 = vmatpush1.msra.mxu0 0.0
      %1494 = vmatprep.subr.mxu0 0.0
      %1495 = vmatpush1.msra.mxu0 0.0
      %1496 = vmatprep.subr.mxu0 0.0
      %1497 = vmatpush1.msra.mxu0 0.0
      %1498 = vmatprep.subr.mxu0 0.0
      %1499 = vmatpush1.msra.mxu0 0.0
      %1500 = vmatprep.subr.mxu0 0.0
      %1501 = vmatpush1.msra.mxu0 0.0
      %1502 = vmatprep.subr.mxu0 0.0
      %1503 = vmatpush1.msra.mxu0 0.0
      %1504 = vmatprep.subr.mxu0 0.0
      %1505 = vmatpush1.msra.mxu0 0.0
      %1506 = vmatprep.subr.mxu0 0.0
      %1507 = vmatpush1.msra.mxu0 0.0
      %1508 = vmatprep.subr.mxu0 0.0
      %1509 = vmatpush1.msra.mxu0 0.0
      %1510 = vmatprep.subr.mxu0 0.0
      %1511 = vmatpush1.msra.mxu0 0.0
      %1512 = vmatprep.subr.mxu0 0.0
      %1513 = vmatpush1.msra.mxu0 0.0
      %1514 = vmatprep.subr.mxu0 0.0
      %1515 = vmatpush1.msra.mxu0 0.0
      %1516 = vmatprep.subr.mxu0 0.0
      %1517 = vmatpush1.msra.mxu0 0.0
      %1518 = vmatprep.subr.mxu0 0.0
      %1519 = vmatpush1.msra.mxu0 0.0
      %1520 = vmatprep.subr.mxu0 0.0
      %1521 = vmatpush1.msra.mxu0 0.0
      %1522 = vmatprep.subr.mxu0 0.0
      %1523 = vmatpush1.msra.mxu0 0.0
      %1524 = vmatprep.subr.mxu0 0.0
      %1525 = vmatpush1.msra.mxu0 0.0
      %1526 = vmatprep.subr.mxu0 0.0
      %1527 = vmatpush1.msra.mxu0 0.0
      %1528 = vmatprep.subr.mxu0 0.0
      %1529 = vmatpush1.msra.mxu0 0.0
      %1530 = vmatprep.subr.mxu0 0.0
      %1531 = vmatpush1.msra.mxu0 0.0
      %1532 = vmatprep.subr.mxu0 0.0
      %1533 = vmatpush1.msra.mxu0 0.0
      %1534 = vmatprep.subr.mxu0 0.0
      %1535 = vmatpush1.msra.mxu0 0.0
      %1536 = vmatprep.subr.mxu0 0.0
      %1537 = vmatpush1.msra.mxu0 0.0
      %1538 = vmatprep.subr.mxu0 0.0
      %1539 = vmatpush1.msra.mxu0 0.0
      %1540 = vmatprep.subr.mxu0 0.0
      %1541 = vmatpush1.msra.mxu0 0.0
      %1542 = vmatprep.mubr.f32.mxu0 0.0
      %1543 = vmatmul.mubr.f32.gmra.mrb[0].mxu0 %v1242
      %v1544 = vpop.f32.mrb[0].mxu0
      %v1545 = vadd.f32 0.0, %v1544
      %v1546 = vpop.f32.mrb[0].mxu0
      %v1547 = vadd.f32 0.0, %v1546
      %1548 = vmatprep.mubr.f32.mxu0 0.0
      %1549 = vmatmul.mubr.f32.gmra.mrb[0].mxu0 %v1245
      %v1550 = vpop.f32.mrb[0].mxu0
      %v1551 = vadd.f32 0.0, %v1550
      %v1552 = vpop.f32.mrb[0].mxu0
      %v1553 = vadd.f32 0.0, %v1552
      %1554 = vdwg.mxu0
      %1555 = vmatprep.subr.mxu0 %v1135
      %1556 = vmatpush1.msra.mxu0 %v1134
      %1557 = vmatprep.subr.mxu0 %v1151
      %1558 = vmatpush1.msra.mxu0 %v1150
      %1559 = vmatprep.subr.mxu0 %v1167
      %1560 = vmatpush1.msra.mxu0 %v1166
      %1561 = vmatprep.subr.mxu0 %v1183
      %1562 = vmatpush1.msra.mxu0 %v1182
      %1563 = vmatprep.subr.mxu0 %v1199
      %1564 = vmatpush1.msra.mxu0 %v1198
      %1565 = vmatprep.subr.mxu0 %v1215
      %1566 = vmatpush1.msra.mxu0 %v1214
      %1567 = vmatprep.subr.mxu0 %v1231
      %1568 = vmatpush1.msra.mxu0 %v1230
      %1569 = vmatprep.subr.mxu0 0.0
      %1570 = vmatpush1.msra.mxu0 0.0
      %1571 = vmatprep.subr.mxu0 0.0
      %1572 = vmatpush1.msra.mxu0 0.0
      %1573 = vmatprep.subr.mxu0 0.0
      %1574 = vmatpush1.msra.mxu0 0.0
      %1575 = vmatprep.subr.mxu0 0.0
      %1576 = vmatpush1.msra.mxu0 0.0
      %1577 = vmatprep.subr.mxu0 0.0
      %1578 = vmatpush1.msra.mxu0 0.0
      %1579 = vmatprep.subr.mxu0 0.0
      %1580 = vmatpush1.msra.mxu0 0.0
      %1581 = vmatprep.subr.mxu0 0.0
      %1582 = vmatpush1.msra.mxu0 0.0
      %1583 = vmatprep.subr.mxu0 0.0
      %1584 = vmatpush1.msra.mxu0 0.0
      %1585 = vmatprep.subr.mxu0 0.0
      %1586 = vmatpush1.msra.mxu0 0.0
      %1587 = vmatprep.subr.mxu0 0.0
      %1588 = vmatpush1.msra.mxu0 0.0
      %1589 = vmatprep.subr.mxu0 0.0
      %1590 = vmatpush1.msra.mxu0 0.0
      %1591 = vmatprep.subr.mxu0 0.0
      %1592 = vmatpush1.msra.mxu0 0.0
      %1593 = vmatprep.subr.mxu0 0.0
      %1594 = vmatpush1.msra.mxu0 0.0
      %1595 = vmatprep.subr.mxu0 0.0
      %1596 = vmatpush1.msra.mxu0 0.0
      %1597 = vmatprep.subr.mxu0 0.0
      %1598 = vmatpush1.msra.mxu0 0.0
      %1599 = vmatprep.subr.mxu0 0.0
      %1600 = vmatpush1.msra.mxu0 0.0
      %1601 = vmatprep.subr.mxu0 0.0
      %1602 = vmatpush1.msra.mxu0 0.0
      %1603 = vmatprep.subr.mxu0 0.0
      %1604 = vmatpush1.msra.mxu0 0.0
      %1605 = vmatprep.subr.mxu0 0.0
      %1606 = vmatpush1.msra.mxu0 0.0
      %1607 = vmatprep.subr.mxu0 0.0
      %1608 = vmatpush1.msra.mxu0 0.0
      %1609 = vmatprep.subr.mxu0 0.0
      %1610 = vmatpush1.msra.mxu0 0.0
      %1611 = vmatprep.subr.mxu0 0.0
      %1612 = vmatpush1.msra.mxu0 0.0
      %1613 = vmatprep.subr.mxu0 0.0
      %1614 = vmatpush1.msra.mxu0 0.0
      %1615 = vmatprep.subr.mxu0 0.0
      %1616 = vmatpush1.msra.mxu0 0.0
      %1617 = vmatprep.subr.mxu0 0.0
      %1618 = vmatpush1.msra.mxu0 0.0
      %1619 = vmatprep.mubr.f32.mxu0 0.0
      %1620 = vmatmul.mubr.f32.gmra.mrb[0].mxu0 %v1242
      %v1621 = vpop.f32.mrb[0].mxu0
      %v1622 = vadd.f32 0.0, %v1621
      %v1623 = vpop.f32.mrb[0].mxu0
      %v1624 = vadd.f32 0.0, %v1623
      %1625 = vmatprep.mubr.f32.mxu0 0.0
      %1626 = vmatmul.mubr.f32.gmra.mrb[0].mxu0 %v1245
      %v1627 = vpop.f32.mrb[0].mxu0
      %v1628 = vadd.f32 0.0, %v1627
      %v1629 = vpop.f32.mrb[0].mxu0
      %v1630 = vadd.f32 0.0, %v1629
      %1631 = vdwg.mxu0
      %1632 = vmatprep.subr.mxu0 %v1137
      %1633 = vmatpush1.msra.mxu0 %v1136
      %1634 = vmatprep.subr.mxu0 %v1153
      %1635 = vmatpush1.msra.mxu0 %v1152
      %1636 = vmatprep.subr.mxu0 %v1169
      %1637 = vmatpush1.msra.mxu0 %v1168
      %1638 = vmatprep.subr.mxu0 %v1185
      %1639 = vmatpush1.msra.mxu0 %v1184
      %1640 = vmatprep.subr.mxu0 %v1201
      %1641 = vmatpush1.msra.mxu0 %v1200
      %1642 = vmatprep.subr.mxu0 %v1217
      %1643 = vmatpush1.msra.mxu0 %v1216
      %1644 = vmatprep.subr.mxu0 %v1233
      %1645 = vmatpush1.msra.mxu0 %v1232
      %1646 = vmatprep.subr.mxu0 0.0
      %1647 = vmatpush1.msra.mxu0 0.0
      %1648 = vmatprep.subr.mxu0 0.0
      %1649 = vmatpush1.msra.mxu0 0.0
      %1650 = vmatprep.subr.mxu0 0.0
      %1651 = vmatpush1.msra.mxu0 0.0
      %1652 = vmatprep.subr.mxu0 0.0
      %1653 = vmatpush1.msra.mxu0 0.0
      %1654 = vmatprep.subr.mxu0 0.0
      %1655 = vmatpush1.msra.mxu0 0.0
      %1656 = vmatprep.subr.mxu0 0.0
      %1657 = vmatpush1.msra.mxu0 0.0
      %1658 = vmatprep.subr.mxu0 0.0
      %1659 = vmatpush1.msra.mxu0 0.0
      %1660 = vmatprep.subr.mxu0 0.0
      %1661 = vmatpush1.msra.mxu0 0.0
      %1662 = vmatprep.subr.mxu0 0.0
      %1663 = vmatpush1.msra.mxu0 0.0
      %1664 = vmatprep.subr.mxu0 0.0
      %1665 = vmatpush1.msra.mxu0 0.0
      %1666 = vmatprep.subr.mxu0 0.0
      %1667 = vmatpush1.msra.mxu0 0.0
      %1668 = vmatprep.subr.mxu0 0.0
      %1669 = vmatpush1.msra.mxu0 0.0
      %1670 = vmatprep.subr.mxu0 0.0
      %1671 = vmatpush1.msra.mxu0 0.0
      %1672 = vmatprep.subr.mxu0 0.0
      %1673 = vmatpush1.msra.mxu0 0.0
      %1674 = vmatprep.subr.mxu0 0.0
      %1675 = vmatpush1.msra.mxu0 0.0
      %1676 = vmatprep.subr.mxu0 0.0
      %1677 = vmatpush1.msra.mxu0 0.0
      %1678 = vmatprep.subr.mxu0 0.0
      %1679 = vmatpush1.msra.mxu0 0.0
      %1680 = vmatprep.subr.mxu0 0.0
      %1681 = vmatpush1.msra.mxu0 0.0
      %1682 = vmatprep.subr.mxu0 0.0
      %1683 = vmatpush1.msra.mxu0 0.0
      %1684 = vmatprep.subr.mxu0 0.0
      %1685 = vmatpush1.msra.mxu0 0.0
      %1686 = vmatprep.subr.mxu0 0.0
      %1687 = vmatpush1.msra.mxu0 0.0
      %1688 = vmatprep.subr.mxu0 0.0
      %1689 = vmatpush1.msra.mxu0 0.0
      %1690 = vmatprep.subr.mxu0 0.0
      %1691 = vmatpush1.msra.mxu0 0.0
      %1692 = vmatprep.subr.mxu0 0.0
      %1693 = vmatpush1.msra.mxu0 0.0
      %1694 = vmatprep.subr.mxu0 0.0
      %1695 = vmatpush1.msra.mxu0 0.0
      %1696 = vmatprep.mubr.f32.mxu0 0.0
      %1697 = vmatmul.mubr.f32.gmra.mrb[0].mxu0 %v1242
      %v1698 = vpop.f32.mrb[0].mxu0
      %v1699 = vadd.f32 0.0, %v1698
      %v1700 = vpop.f32.mrb[0].mxu0
      %v1701 = vadd.f32 0.0, %v1700
      %1702 = vmatprep.mubr.f32.mxu0 0.0
      %1703 = vmatmul.mubr.f32.gmra.mrb[0].mxu0 %v1245
      %v1704 = vpop.f32.mrb[0].mxu0
      %v1705 = vadd.f32 0.0, %v1704
      %v1706 = vpop.f32.mrb[0].mxu0
      %v1707 = vadd.f32 0.0, %v1706
      %1708 = vdwg.mxu0
      %1709 = vmatprep.subr.mxu0 %v1139
      %1710 = vmatpush1.msra.mxu0 %v1138
      %1711 = vmatprep.subr.mxu0 %v1155
      %1712 = vmatpush1.msra.mxu0 %v1154
      %1713 = vmatprep.subr.mxu0 %v1171
      %1714 = vmatpush1.msra.mxu0 %v1170
      %1715 = vmatprep.subr.mxu0 %v1187
      %1716 = vmatpush1.msra.mxu0 %v1186
      %1717 = vmatprep.subr.mxu0 %v1203
      %1718 = vmatpush1.msra.mxu0 %v1202
      %1719 = vmatprep.subr.mxu0 %v1219
      %1720 = vmatpush1.msra.mxu0 %v1218
      %1721 = vmatprep.subr.mxu0 %v1235
      %1722 = vmatpush1.msra.mxu0 %v1234
      %1723 = vmatprep.subr.mxu0 0.0
      %1724 = vmatpush1.msra.mxu0 0.0
      %1725 = vmatprep.subr.mxu0 0.0
      %1726 = vmatpush1.msra.mxu0 0.0
      %1727 = vmatprep.subr.mxu0 0.0
      %1728 = vmatpush1.msra.mxu0 0.0
      %1729 = vmatprep.subr.mxu0 0.0
      %1730 = vmatpush1.msra.mxu0 0.0
      %1731 = vmatprep.subr.mxu0 0.0
      %1732 = vmatpush1.msra.mxu0 0.0
      %1733 = vmatprep.subr.mxu0 0.0
      %1734 = vmatpush1.msra.mxu0 0.0
      %1735 = vmatprep.subr.mxu0 0.0
      %1736 = vmatpush1.msra.mxu0 0.0
      %1737 = vmatprep.subr.mxu0 0.0
      %1738 = vmatpush1.msra.mxu0 0.0
      %1739 = vmatprep.subr.mxu0 0.0
      %1740 = vmatpush1.msra.mxu0 0.0
      %1741 = vmatprep.subr.mxu0 0.0
      %1742 = vmatpush1.msra.mxu0 0.0
      %1743 = vmatprep.subr.mxu0 0.0
      %1744 = vmatpush1.msra.mxu0 0.0
      %1745 = vmatprep.subr.mxu0 0.0
      %1746 = vmatpush1.msra.mxu0 0.0
      %1747 = vmatprep.subr.mxu0 0.0
      %1748 = vmatpush1.msra.mxu0 0.0
      %1749 = vmatprep.subr.mxu0 0.0
      %1750 = vmatpush1.msra.mxu0 0.0
      %1751 = vmatprep.subr.mxu0 0.0
      %1752 = vmatpush1.msra.mxu0 0.0
      %1753 = vmatprep.subr.mxu0 0.0
      %1754 = vmatpush1.msra.mxu0 0.0
      %1755 = vmatprep.subr.mxu0 0.0
      %1756 = vmatpush1.msra.mxu0 0.0
      %1757 = vmatprep.subr.mxu0 0.0
      %1758 = vmatpush1.msra.mxu0 0.0
      %1759 = vmatprep.subr.mxu0 0.0
      %1760 = vmatpush1.msra.mxu0 0.0
      %1761 = vmatprep.subr.mxu0 0.0
      %1762 = vmatpush1.msra.mxu0 0.0
      %1763 = vmatprep.subr.mxu0 0.0
      %1764 = vmatpush1.msra.mxu0 0.0
      %1765 = vmatprep.subr.mxu0 0.0
      %1766 = vmatpush1.msra.mxu0 0.0
      %1767 = vmatprep.subr.mxu0 0.0
      %1768 = vmatpush1.msra.mxu0 0.0
      %1769 = vmatprep.subr.mxu0 0.0
      %1770 = vmatpush1.msra.mxu0 0.0
      %1771 = vmatprep.subr.mxu0 0.0
      %1772 = vmatpush1.msra.mxu0 0.0
      %1773 = vmatprep.mubr.f32.mxu0 0.0
      %1774 = vmatmul.mubr.f32.gmra.mrb[0].mxu0 %v1242
      %v1775 = vpop.f32.mrb[0].mxu0
      %v1776 = vadd.f32 0.0, %v1775
      %v1777 = vpop.f32.mrb[0].mxu0
      %v1778 = vadd.f32 0.0, %v1777
      %1779 = vmatprep.mubr.f32.mxu0 0.0
      %1780 = vmatmul.mubr.f32.gmra.mrb[0].mxu0 %v1245
      %v1781 = vpop.f32.mrb[0].mxu0
      %v1782 = vadd.f32 0.0, %v1781
      %v1783 = vpop.f32.mrb[0].mxu0
      %v1784 = vadd.f32 0.0, %v1783
      %1785 = vdwg.mxu0
      %1786 = vmatprep.subr.mxu0 %v1141
      %1787 = vmatpush1.msra.mxu0 %v1140
      %1788 = vmatprep.subr.mxu0 %v1157
      %1789 = vmatpush1.msra.mxu0 %v1156
      %1790 = vmatprep.subr.mxu0 %v1173
      %1791 = vmatpush1.msra.mxu0 %v1172
      %1792 = vmatprep.subr.mxu0 %v1189
      %1793 = vmatpush1.msra.mxu0 %v1188
      %1794 = vmatprep.subr.mxu0 %v1205
      %1795 = vmatpush1.msra.mxu0 %v1204
      %1796 = vmatprep.subr.mxu0 %v1221
      %1797 = vmatpush1.msra.mxu0 %v1220
      %1798 = vmatprep.subr.mxu0 %v1237
      %1799 = vmatpush1.msra.mxu0 %v1236
      %1800 = vmatprep.subr.mxu0 0.0
      %1801 = vmatpush1.msra.mxu0 0.0
      %1802 = vmatprep.subr.mxu0 0.0
      %1803 = vmatpush1.msra.mxu0 0.0
      %1804 = vmatprep.subr.mxu0 0.0
      %1805 = vmatpush1.msra.mxu0 0.0
      %1806 = vmatprep.subr.mxu0 0.0
      %1807 = vmatpush1.msra.mxu0 0.0
      %1808 = vmatprep.subr.mxu0 0.0
      %1809 = vmatpush1.msra.mxu0 0.0
      %1810 = vmatprep.subr.mxu0 0.0
      %1811 = vmatpush1.msra.mxu0 0.0
      %1812 = vmatprep.subr.mxu0 0.0
      %1813 = vmatpush1.msra.mxu0 0.0
      %1814 = vmatprep.subr.mxu0 0.0
      %1815 = vmatpush1.msra.mxu0 0.0
      %1816 = vmatprep.subr.mxu0 0.0
      %1817 = vmatpush1.msra.mxu0 0.0
      %1818 = vmatprep.subr.mxu0 0.0
      %1819 = vmatpush1.msra.mxu0 0.0
      %1820 = vmatprep.subr.mxu0 0.0
      %1821 = vmatpush1.msra.mxu0 0.0
      %1822 = vmatprep.subr.mxu0 0.0
      %1823 = vmatpush1.msra.mxu0 0.0
      %1824 = vmatprep.subr.mxu0 0.0
      %1825 = vmatpush1.msra.mxu0 0.0
      %1826 = vmatprep.subr.mxu0 0.0
      %1827 = vmatpush1.msra.mxu0 0.0
      %1828 = vmatprep.subr.mxu0 0.0
      %1829 = vmatpush1.msra.mxu0 0.0
      %1830 = vmatprep.subr.mxu0 0.0
      %1831 = vmatpush1.msra.mxu0 0.0
      %1832 = vmatprep.subr.mxu0 0.0
      %1833 = vmatpush1.msra.mxu0 0.0
      %1834 = vmatprep.subr.mxu0 0.0
      %1835 = vmatpush1.msra.mxu0 0.0
      %1836 = vmatprep.subr.mxu0 0.0
      %1837 = vmatpush1.msra.mxu0 0.0
      %1838 = vmatprep.subr.mxu0 0.0
      %1839 = vmatpush1.msra.mxu0 0.0
      %1840 = vmatprep.subr.mxu0 0.0
      %1841 = vmatpush1.msra.mxu0 0.0
      %1842 = vmatprep.subr.mxu0 0.0
      %1843 = vmatpush1.msra.mxu0 0.0
      %1844 = vmatprep.subr.mxu0 0.0
      %1845 = vmatpush1.msra.mxu0 0.0
      %1846 = vmatprep.subr.mxu0 0.0
      %1847 = vmatpush1.msra.mxu0 0.0
      %1848 = vmatprep.subr.mxu0 0.0
      %1849 = vmatpush1.msra.mxu0 0.0
      %1850 = vmatprep.mubr.f32.mxu0 0.0
      %1851 = vmatmul.mubr.f32.gmra.mrb[0].mxu0 %v1242
      %v1852 = vpop.f32.mrb[0].mxu0
      %v1853 = vadd.f32 0.0, %v1852
      %v1854 = vpop.f32.mrb[0].mxu0
      %v1855 = vadd.f32 0.0, %v1854
      %1856 = vmatprep.mubr.f32.mxu0 0.0
      %1857 = vmatmul.mubr.f32.gmra.mrb[0].mxu0 %v1245
      %v1858 = vpop.f32.mrb[0].mxu0
      %v1859 = vadd.f32 0.0, %v1858
      %v1860 = vpop.f32.mrb[0].mxu0
      %v1861 = vadd.f32 0.0, %v1860
      %1862 = vdwg.mxu0
      %v1863 = vmax.f32 %v1314, 0.0
      %v1864 = vmax.f32 %v1316, 0.0
      %v1865 = vmax.f32 %v1391, 0.0
      %v1866 = vmax.f32 %v1393, 0.0
      %v1867 = vmax.f32 %v1468, 0.0
      %v1868 = vmax.f32 %v1470, 0.0
      %v1869 = vmax.f32 %v1545, 0.0
      %v1870 = vmax.f32 %v1547, 0.0
      %v1871 = vmax.f32 %v1622, 0.0
      %v1872 = vmax.f32 %v1624, 0.0
      %v1873 = vmax.f32 %v1699, 0.0
      %v1874 = vmax.f32 %v1701, 0.0
      %v1875 = vmax.f32 %v1776, 0.0
      %v1876 = vmax.f32 %v1778, 0.0
      %v1877 = vmax.f32 %v1853, 0.0
      %v1878 = vmax.f32 %v1855, 0.0
      %v1879 = vmax.f32 %v1320, 0.0
      %v1880 = vmax.f32 %v1322, 0.0
      %v1881 = vmax.f32 %v1397, 0.0
      %v1882 = vmax.f32 %v1399, 0.0
      %v1883 = vmax.f32 %v1474, 0.0
      %v1884 = vmax.f32 %v1476, 0.0
      %v1885 = vmax.f32 %v1551, 0.0
      %v1886 = vmax.f32 %v1553, 0.0
      %v1887 = vmax.f32 %v1628, 0.0
      %v1888 = vmax.f32 %v1630, 0.0
      %v1889 = vmax.f32 %v1705, 0.0
      %v1890 = vmax.f32 %v1707, 0.0
      %v1891 = vmax.f32 %v1782, 0.0
      %v1892 = vmax.f32 %v1784, 0.0
      %v1893 = vmax.f32 %v1859, 0.0
      %v1894 = vmax.f32 %v1861, 0.0
      %v1895 = vld [vmem:[%s4] sm:$0xff]
      %v1896 = vld [vmem:[%s4 + $0x8] sm:$0xff]
      %v1897 = vld [vmem:[%s4 + $0x10] sm:$0xff]
      %v1898 = vld [vmem:[%s4 + $0x18] sm:$0xff]
      %v1899 = vld [vmem:[%s4 + $0x20] sm:$0xff]
      %v1900 = vld [vmem:[%s4 + $0x28] sm:$0xff]
      %v1901 = vld [vmem:[%s4 + $0x30] sm:$0xff]
      %v1902 = vld [vmem:[%s4 + $0x38] sm:$0xff]
      %v1903 = vld [vmem:[%s4 + $0x40] sm:$0xff]
      %v1904 = vld [vmem:[%s4 + $0x48] sm:$0xff]
      %v1905 = vld [vmem:[%s4 + $0x50] sm:$0xff]
      %v1906 = vld [vmem:[%s4 + $0x58] sm:$0xff]
      %v1907 = vld [vmem:[%s4 + $0x60] sm:$0xff]
      %v1908 = vld [vmem:[%s4 + $0x68] sm:$0xff]
      %v1909 = vld [vmem:[%s4 + $0x70] sm:$0xff]
      %v1910 = vld [vmem:[%s4 + $0x78] sm:$0xff]
      %v1911 = vld [vmem:[%s4 + $0x80] sm:$0xff]
      %v1912 = vld [vmem:[%s4 + $0x88] sm:$0xff]
      %v1913 = vld [vmem:[%s4 + $0x90] sm:$0xff]
      %v1914 = vld [vmem:[%s4 + $0x98] sm:$0xff]
      %v1915 = vld [vmem:[%s4 + $0xa0] sm:$0xff]
      %v1916 = vld [vmem:[%s4 + $0xa8] sm:$0xff]
      %v1917 = vld [vmem:[%s4 + $0xb0] sm:$0xff]
      %v1918 = vld [vmem:[%s4 + $0xb8] sm:$0xff]
      %v1919 = vld [vmem:[%s4 + $0xc0] sm:$0xff]
      %v1920 = vld [vmem:[%s4 + $0xc8] sm:$0xff]
      %v1921 = vld [vmem:[%s4 + $0xd0] sm:$0xff]
      %v1922 = vld [vmem:[%s4 + $0xd8] sm:$0xff]
      %v1923 = vld [vmem:[%s4 + $0xe0] sm:$0xff]
      %v1924 = vld [vmem:[%s4 + $0xe8] sm:$0xff]
      %v1925 = vld [vmem:[%s4 + $0xf0] sm:$0xff]
      %v1926 = vld [vmem:[%s4 + $0xf8] sm:$0xff]
      %v1927 = vld [vmem:[%s4 + $0x100] sm:$0xff]
      %v1928 = vld [vmem:[%s4 + $0x108] sm:$0xff]
      %v1929 = vld [vmem:[%s4 + $0x110] sm:$0xff]
      %v1930 = vld [vmem:[%s4 + $0x118] sm:$0xff]
      %v1931 = vld [vmem:[%s4 + $0x120] sm:$0xff]
      %v1932 = vld [vmem:[%s4 + $0x128] sm:$0xff]
      %v1933 = vld [vmem:[%s4 + $0x130] sm:$0xff]
      %v1934 = vld [vmem:[%s4 + $0x138] sm:$0xff]
      %v1935 = vld [vmem:[%s4 + $0x140] sm:$0xff]
      %v1936 = vld [vmem:[%s4 + $0x148] sm:$0xff]
      %v1937 = vld [vmem:[%s4 + $0x150] sm:$0xff]
      %v1938 = vld [vmem:[%s4 + $0x158] sm:$0xff]
      %v1939 = vld [vmem:[%s4 + $0x160] sm:$0xff]
      %v1940 = vld [vmem:[%s4 + $0x168] sm:$0xff]
      %v1941 = vld [vmem:[%s4 + $0x170] sm:$0xff]
      %v1942 = vld [vmem:[%s4 + $0x178] sm:$0xff]
      %v1943 = vld [vmem:[%s4 + $0x180] sm:$0xff]
      %v1944 = vld [vmem:[%s4 + $0x188] sm:$0xff]
      %v1945 = vld [vmem:[%s4 + $0x190] sm:$0xff]
      %v1946 = vld [vmem:[%s4 + $0x198] sm:$0xff]
      %v1947 = vld [vmem:[%s4 + $0x1a0] sm:$0xff]
      %v1948 = vld [vmem:[%s4 + $0x1a8] sm:$0xff]
      %v1949 = vld [vmem:[%s4 + $0x1b0] sm:$0xff]
      %v1950 = vld [vmem:[%s4 + $0x1b8] sm:$0xff]
      %v1951 = vld [vmem:[%s4 + $0x1c0] sm:$0xff]
      %v1952 = vld [vmem:[%s4 + $0x1c8] sm:$0xff]
      %v1953 = vld [vmem:[%s4 + $0x1d0] sm:$0xff]
      %v1954 = vld [vmem:[%s4 + $0x1d8] sm:$0xff]
      %v1955 = vld [vmem:[%s4 + $0x1e0] sm:$0xff]
      %v1956 = vld [vmem:[%s4 + $0x1e8] sm:$0xff]
      %v1957 = vld [vmem:[%s4 + $0x1f0] sm:$0xff]
      %v1958 = vld [vmem:[%s4 + $0x1f8] sm:$0xff]
      %v1959 = vld [vmem:[%s4 + $0x200] sm:$0xff]
      %v1960 = vld [vmem:[%s4 + $0x208] sm:$0xff]
      %v1961 = vld [vmem:[%s4 + $0x210] sm:$0xff]
      %v1962 = vld [vmem:[%s4 + $0x218] sm:$0xff]
      %v1963 = vld [vmem:[%s4 + $0x220] sm:$0xff]
      %v1964 = vld [vmem:[%s4 + $0x228] sm:$0xff]
      %v1965 = vld [vmem:[%s4 + $0x230] sm:$0xff]
      %v1966 = vld [vmem:[%s4 + $0x238] sm:$0xff]
      %v1967 = vld [vmem:[%s4 + $0x240] sm:$0xff]
      %v1968 = vld [vmem:[%s4 + $0x248] sm:$0xff]
      %v1969 = vld [vmem:[%s4 + $0x250] sm:$0xff]
      %v1970 = vld [vmem:[%s4 + $0x258] sm:$0xff]
      %v1971 = vld [vmem:[%s4 + $0x260] sm:$0xff]
      %v1972 = vld [vmem:[%s4 + $0x268] sm:$0xff]
      %v1973 = vld [vmem:[%s4 + $0x270] sm:$0xff]
      %v1974 = vld [vmem:[%s4 + $0x278] sm:$0xff]
      %v1975 = vld [vmem:[%s4 + $0x280] sm:$0xff]
      %v1976 = vld [vmem:[%s4 + $0x288] sm:$0xff]
      %v1977 = vld [vmem:[%s4 + $0x290] sm:$0xff]
      %v1978 = vld [vmem:[%s4 + $0x298] sm:$0xff]
      %v1979 = vld [vmem:[%s4 + $0x2a0] sm:$0xff]
      %v1980 = vld [vmem:[%s4 + $0x2a8] sm:$0xff]
      %v1981 = vld [vmem:[%s4 + $0x2b0] sm:$0xff]
      %v1982 = vld [vmem:[%s4 + $0x2b8] sm:$0xff]
      %v1983 = vld [vmem:[%s4 + $0x2c0] sm:$0xff]
      %v1984 = vld [vmem:[%s4 + $0x2c8] sm:$0xff]
      %v1985 = vld [vmem:[%s4 + $0x2d0] sm:$0xff]
      %v1986 = vld [vmem:[%s4 + $0x2d8] sm:$0xff]
      %v1987 = vld [vmem:[%s4 + $0x2e0] sm:$0xff]
      %v1988 = vld [vmem:[%s4 + $0x2e8] sm:$0xff]
      %v1989 = vld [vmem:[%s4 + $0x2f0] sm:$0xff]
      %v1990 = vld [vmem:[%s4 + $0x2f8] sm:$0xff]
      %v1991 = vld [vmem:[%s4 + $0x300] sm:$0xff]
      %v1992 = vld [vmem:[%s4 + $0x308] sm:$0xff]
      %v1993 = vld [vmem:[%s4 + $0x310] sm:$0xff]
      %v1994 = vld [vmem:[%s4 + $0x318] sm:$0xff]
      %v1995 = vld [vmem:[%s4 + $0x320] sm:$0xff]
      %v1996 = vld [vmem:[%s4 + $0x328] sm:$0xff]
      %v1997 = vld [vmem:[%s4 + $0x330] sm:$0xff]
      %v1998 = vld [vmem:[%s4 + $0x338] sm:$0xff]
      %v1999 = vld [vmem:[%s4 + $0x340] sm:$0xff]
      %v2000 = vld [vmem:[%s4 + $0x348] sm:$0xff]
      %v2001 = vld [vmem:[%s4 + $0x350] sm:$0xff]
      %v2002 = vld [vmem:[%s4 + $0x358] sm:$0xff]
      %v2003 = vld [vmem:[%s4 + $0x360] sm:$0xff]
      %v2004 = vld [vmem:[%s4 + $0x368] sm:$0xff]
      %v2005 = vld [vmem:[%s4 + $0x370] sm:$0xff]
      %v2006 = vld [vmem:[%s4 + $0x378] sm:$0xff]
      %v2007 = vld [vmem:[%s4 + $0x380] sm:$0xff]
      %v2008 = vld [vmem:[%s4 + $0x388] sm:$0xff]
      %v2009 = vld [vmem:[%s4 + $0x390] sm:$0xff]
      %v2010 = vld [vmem:[%s4 + $0x398] sm:$0xff]
      %v2011 = vld [vmem:[%s4 + $0x3a0] sm:$0xff]
      %v2012 = vld [vmem:[%s4 + $0x3a8] sm:$0xff]
      %v2013 = vld [vmem:[%s4 + $0x3b0] sm:$0xff]
      %v2014 = vld [vmem:[%s4 + $0x3b8] sm:$0xff]
      %v2015 = vld [vmem:[%s4 + $0x3c0] sm:$0xff]
      %v2016 = vld [vmem:[%s4 + $0x3c8] sm:$0xff]
      %v2017 = vld [vmem:[%s4 + $0x3d0] sm:$0xff]
      %v2018 = vld [vmem:[%s4 + $0x3d8] sm:$0xff]
      %v2019 = vld [vmem:[%s4 + $0x3e0] sm:$0xff]
      %v2020 = vld [vmem:[%s4 + $0x3e8] sm:$0xff]
      %v2021 = vld [vmem:[%s4 + $0x3f0] sm:$0xff]
      %v2022 = vld [vmem:[%s4 + $0x3f8] sm:$0xff]
      %v2023 = vld [vmem:[%s4 + $0x400] sm:$0xff]
      %v2024 = vld [vmem:[%s4 + $0x408] sm:$0xff]
      %v2025 = vld [vmem:[%s4 + $0x410] sm:$0xff]
      %v2026 = vld [vmem:[%s4 + $0x418] sm:$0xff]
      %v2027 = vld [vmem:[%s4 + $0x420] sm:$0xff]
      %v2028 = vld [vmem:[%s4 + $0x428] sm:$0xff]
      %v2029 = vld [vmem:[%s4 + $0x430] sm:$0xff]
      %v2030 = vld [vmem:[%s4 + $0x438] sm:$0xff]
      %v2031 = vld [vmem:[%s4 + $0x440] sm:$0xff]
      %v2032 = vld [vmem:[%s4 + $0x448] sm:$0xff]
      %v2033 = vld [vmem:[%s4 + $0x450] sm:$0xff]
      %v2034 = vld [vmem:[%s4 + $0x458] sm:$0xff]
      %v2035 = vld [vmem:[%s4 + $0x460] sm:$0xff]
      %v2036 = vld [vmem:[%s4 + $0x468] sm:$0xff]
      %v2037 = vld [vmem:[%s4 + $0x470] sm:$0xff]
      %v2038 = vld [vmem:[%s4 + $0x478] sm:$0xff]
      %v2039 = vld [vmem:[%s4 + $0x480] sm:$0xff]
      %v2040 = vld [vmem:[%s4 + $0x488] sm:$0xff]
      %v2041 = vld [vmem:[%s4 + $0x490] sm:$0xff]
      %v2042 = vld [vmem:[%s4 + $0x498] sm:$0xff]
      %v2043 = vld [vmem:[%s4 + $0x4a0] sm:$0xff]
      %v2044 = vld [vmem:[%s4 + $0x4a8] sm:$0xff]
      %v2045 = vld [vmem:[%s4 + $0x4b0] sm:$0xff]
      %v2046 = vld [vmem:[%s4 + $0x4b8] sm:$0xff]
      %v2047 = vld [vmem:[%s4 + $0x4c0] sm:$0xff]
      %v2048 = vld [vmem:[%s4 + $0x4c8] sm:$0xff]
      %v2049 = vld [vmem:[%s4 + $0x4d0] sm:$0xff]
      %v2050 = vld [vmem:[%s4 + $0x4d8] sm:$0xff]
      %v2051 = vld [vmem:[%s4 + $0x4e0] sm:$0xff]
      %v2052 = vld [vmem:[%s4 + $0x4e8] sm:$0xff]
      %v2053 = vld [vmem:[%s4 + $0x4f0] sm:$0xff]
      %v2054 = vld [vmem:[%s4 + $0x4f8] sm:$0xff]
      %v2055 = vld [vmem:[%s4 + $0x500] sm:$0xff]
      %v2056 = vld [vmem:[%s4 + $0x508] sm:$0xff]
      %v2057 = vld [vmem:[%s4 + $0x510] sm:$0xff]
      %v2058 = vld [vmem:[%s4 + $0x518] sm:$0xff]
      %v2059 = vld [vmem:[%s4 + $0x520] sm:$0xff]
      %v2060 = vld [vmem:[%s4 + $0x528] sm:$0xff]
      %v2061 = vld [vmem:[%s4 + $0x530] sm:$0xff]
      %v2062 = vld [vmem:[%s4 + $0x538] sm:$0xff]
      %v2063 = vld [vmem:[%s4 + $0x540] sm:$0xff]
      %v2064 = vld [vmem:[%s4 + $0x548] sm:$0xff]
      %v2065 = vld [vmem:[%s4 + $0x550] sm:$0xff]
      %v2066 = vld [vmem:[%s4 + $0x558] sm:$0xff]
      %v2067 = vld [vmem:[%s4 + $0x560] sm:$0xff]
      %v2068 = vld [vmem:[%s4 + $0x568] sm:$0xff]
      %v2069 = vld [vmem:[%s4 + $0x570] sm:$0xff]
      %v2070 = vld [vmem:[%s4 + $0x578] sm:$0xff]
      %v2071 = vld [vmem:[%s4 + $0x580] sm:$0xff]
      %v2072 = vld [vmem:[%s4 + $0x588] sm:$0xff]
      %v2073 = vld [vmem:[%s4 + $0x590] sm:$0xff]
      %v2074 = vld [vmem:[%s4 + $0x598] sm:$0xff]
      %v2075 = vld [vmem:[%s4 + $0x5a0] sm:$0xff]
      %v2076 = vld [vmem:[%s4 + $0x5a8] sm:$0xff]
      %v2077 = vld [vmem:[%s4 + $0x5b0] sm:$0xff]
      %v2078 = vld [vmem:[%s4 + $0x5b8] sm:$0xff]
      %v2079 = vld [vmem:[%s4 + $0x5c0] sm:$0xff]
      %v2080 = vld [vmem:[%s4 + $0x5c8] sm:$0xff]
      %v2081 = vld [vmem:[%s4 + $0x5d0] sm:$0xff]
      %v2082 = vld [vmem:[%s4 + $0x5d8] sm:$0xff]
      %v2083 = vld [vmem:[%s4 + $0x5e0] sm:$0xff]
      %v2084 = vld [vmem:[%s4 + $0x5e8] sm:$0xff]
      %v2085 = vld [vmem:[%s4 + $0x5f0] sm:$0xff]
      %v2086 = vld [vmem:[%s4 + $0x5f8] sm:$0xff]
      %v2087 = vld [vmem:[%s4 + $0x600] sm:$0xff]
      %v2088 = vld [vmem:[%s4 + $0x608] sm:$0xff]
      %v2089 = vld [vmem:[%s4 + $0x610] sm:$0xff]
      %v2090 = vld [vmem:[%s4 + $0x618] sm:$0xff]
      %v2091 = vld [vmem:[%s4 + $0x620] sm:$0xff]
      %v2092 = vld [vmem:[%s4 + $0x628] sm:$0xff]
      %v2093 = vld [vmem:[%s4 + $0x630] sm:$0xff]
      %v2094 = vld [vmem:[%s4 + $0x638] sm:$0xff]
      %v2095 = vld [vmem:[%s4 + $0x640] sm:$0xff]
      %v2096 = vld [vmem:[%s4 + $0x648] sm:$0xff]
      %v2097 = vld [vmem:[%s4 + $0x650] sm:$0xff]
      %v2098 = vld [vmem:[%s4 + $0x658] sm:$0xff]
      %v2099 = vld [vmem:[%s4 + $0x660] sm:$0xff]
      %v2100 = vld [vmem:[%s4 + $0x668] sm:$0xff]
      %v2101 = vld [vmem:[%s4 + $0x670] sm:$0xff]
      %v2102 = vld [vmem:[%s4 + $0x678] sm:$0xff]
      %v2103 = vld [vmem:[%s4 + $0x680] sm:$0xff]
      %v2104 = vld [vmem:[%s4 + $0x688] sm:$0xff]
      %v2105 = vld [vmem:[%s4 + $0x690] sm:$0xff]
      %v2106 = vld [vmem:[%s4 + $0x698] sm:$0xff]
      %v2107 = vld [vmem:[%s4 + $0x6a0] sm:$0xff]
      %v2108 = vld [vmem:[%s4 + $0x6a8] sm:$0xff]
      %v2109 = vld [vmem:[%s4 + $0x6b0] sm:$0xff]
      %v2110 = vld [vmem:[%s4 + $0x6b8] sm:$0xff]
      %v2111 = vld [vmem:[%s4 + $0x6c0] sm:$0xff]
      %v2112 = vld [vmem:[%s4 + $0x6c8] sm:$0xff]
      %v2113 = vld [vmem:[%s4 + $0x6d0] sm:$0xff]
      %v2114 = vld [vmem:[%s4 + $0x6d8] sm:$0xff]
      %v2115 = vld [vmem:[%s4 + $0x6e0] sm:$0xff]
      %v2116 = vld [vmem:[%s4 + $0x6e8] sm:$0xff]
      %v2117 = vld [vmem:[%s4 + $0x6f0] sm:$0xff]
      %v2118 = vld [vmem:[%s4 + $0x6f8] sm:$0xff]
      %v2119 = vld [vmem:[%s4 + $0x700] sm:$0xff]
      %v2120 = vld [vmem:[%s4 + $0x708] sm:$0xff]
      %v2121 = vld [vmem:[%s4 + $0x710] sm:$0xff]
      %v2122 = vld [vmem:[%s4 + $0x718] sm:$0xff]
      %v2123 = vld [vmem:[%s4 + $0x720] sm:$0xff]
      %v2124 = vld [vmem:[%s4 + $0x728] sm:$0xff]
      %v2125 = vld [vmem:[%s4 + $0x730] sm:$0xff]
      %v2126 = vld [vmem:[%s4 + $0x738] sm:$0xff]
      %v2127 = vld [vmem:[%s4 + $0x740] sm:$0xff]
      %v2128 = vld [vmem:[%s4 + $0x748] sm:$0xff]
      %v2129 = vld [vmem:[%s4 + $0x750] sm:$0xff]
      %v2130 = vld [vmem:[%s4 + $0x758] sm:$0xff]
      %v2131 = vld [vmem:[%s4 + $0x760] sm:$0xff]
      %v2132 = vld [vmem:[%s4 + $0x768] sm:$0xff]
      %v2133 = vld [vmem:[%s4 + $0x770] sm:$0xff]
      %v2134 = vld [vmem:[%s4 + $0x778] sm:$0xff]
      %v2135 = vld [vmem:[%s4 + $0x780] sm:$0xff]
      %v2136 = vld [vmem:[%s4 + $0x788] sm:$0xff]
      %v2137 = vld [vmem:[%s4 + $0x790] sm:$0xff]
      %v2138 = vld [vmem:[%s4 + $0x798] sm:$0xff]
      %v2139 = vld [vmem:[%s4 + $0x7a0] sm:$0xff]
      %v2140 = vld [vmem:[%s4 + $0x7a8] sm:$0xff]
      %v2141 = vld [vmem:[%s4 + $0x7b0] sm:$0xff]
      %v2142 = vld [vmem:[%s4 + $0x7b8] sm:$0xff]
      %v2143 = vld [vmem:[%s4 + $0x7c0] sm:$0xff]
      %v2144 = vld [vmem:[%s4 + $0x7c8] sm:$0xff]
      %v2145 = vld [vmem:[%s4 + $0x7d0] sm:$0xff]
      %v2146 = vld [vmem:[%s4 + $0x7d8] sm:$0xff]
      %v2147 = vld [vmem:[%s4 + $0x7e0] sm:$0xff]
      %v2148 = vld [vmem:[%s4 + $0x7e8] sm:$0xff]
      %v2149 = vld [vmem:[%s4 + $0x7f0] sm:$0xff]
      %v2150 = vld [vmem:[%s4 + $0x7f8] sm:$0xff]
      %2151 = vmatprep.subr.mxu0 0.0
      %2152 = vmatpush1.msra.mxu0 %v1895
      %2153 = vmatprep.subr.mxu0 0.0
      %2154 = vmatpush1.msra.mxu0 %v1896
      %2155 = vmatprep.subr.mxu0 0.0
      %2156 = vmatpush1.msra.mxu0 %v1897
      %2157 = vmatprep.subr.mxu0 0.0
      %2158 = vmatpush1.msra.mxu0 %v1898
      %2159 = vmatprep.subr.mxu0 0.0
      %2160 = vmatpush1.msra.mxu0 %v1899
      %2161 = vmatprep.subr.mxu0 0.0
      %2162 = vmatpush1.msra.mxu0 %v1900
      %2163 = vmatprep.subr.mxu0 0.0
      %2164 = vmatpush1.msra.mxu0 %v1901
      %2165 = vmatprep.subr.mxu0 0.0
      %2166 = vmatpush1.msra.mxu0 %v1902
      %2167 = vmatprep.subr.mxu0 0.0
      %2168 = vmatpush1.msra.mxu0 %v1903
      %2169 = vmatprep.subr.mxu0 0.0
      %2170 = vmatpush1.msra.mxu0 %v1904
      %2171 = vmatprep.subr.mxu0 0.0
      %2172 = vmatpush1.msra.mxu0 %v1905
      %2173 = vmatprep.subr.mxu0 0.0
      %2174 = vmatpush1.msra.mxu0 %v1906
      %2175 = vmatprep.subr.mxu0 0.0
      %2176 = vmatpush1.msra.mxu0 %v1907
      %2177 = vmatprep.subr.mxu0 0.0
      %2178 = vmatpush1.msra.mxu0 %v1908
      %2179 = vmatprep.subr.mxu0 0.0
      %2180 = vmatpush1.msra.mxu0 %v1909
      %2181 = vmatprep.subr.mxu0 0.0
      %2182 = vmatpush1.msra.mxu0 %v1910
      %2183 = vmatprep.subr.mxu0 0.0
      %2184 = vmatpush1.msra.mxu0 %v1911
      %2185 = vmatprep.subr.mxu0 0.0
      %2186 = vmatpush1.msra.mxu0 %v1912
      %2187 = vmatprep.subr.mxu0 0.0
      %2188 = vmatpush1.msra.mxu0 %v1913
      %2189 = vmatprep.subr.mxu0 0.0
      %2190 = vmatpush1.msra.mxu0 %v1914
      %2191 = vmatprep.subr.mxu0 0.0
      %2192 = vmatpush1.msra.mxu0 %v1915
      %2193 = vmatprep.subr.mxu0 0.0
      %2194 = vmatpush1.msra.mxu0 %v1916
      %2195 = vmatprep.subr.mxu0 0.0
      %2196 = vmatpush1.msra.mxu0 %v1917
      %2197 = vmatprep.subr.mxu0 0.0
      %2198 = vmatpush1.msra.mxu0 %v1918
      %2199 = vmatprep.subr.mxu0 0.0
      %2200 = vmatpush1.msra.mxu0 %v1919
      %2201 = vmatprep.subr.mxu0 0.0
      %2202 = vmatpush1.msra.mxu0 %v1920
      %2203 = vmatprep.subr.mxu0 0.0
      %2204 = vmatpush1.msra.mxu0 %v1921
      %2205 = vmatprep.subr.mxu0 0.0
      %2206 = vmatpush1.msra.mxu0 %v1922
      %2207 = vmatprep.subr.mxu0 0.0
      %2208 = vmatpush1.msra.mxu0 %v1923
      %2209 = vmatprep.subr.mxu0 0.0
      %2210 = vmatpush1.msra.mxu0 %v1924
      %2211 = vmatprep.subr.mxu0 0.0
      %2212 = vmatpush1.msra.mxu0 %v1925
      %2213 = vmatprep.subr.mxu0 0.0
      %2214 = vmatpush1.msra.mxu0 %v1926
      %2215 = vmatprep.mubr.f32.mxu0 %v1864
      %2216 = vmatmul.mubr.f32.gmra.mrb[0].mxu0 %v1863
      %v2217 = vpop.f32.mrb[0].mxu0
      %v2218 = vadd.f32 0.0, %v2217
      %v2219 = vpop.f32.mrb[0].mxu0
      %2220 = vmatprep.mubr.f32.mxu0 %v1880
      %2221 = vmatmul.mubr.f32.gmra.mrb[0].mxu0 %v1879
      %v2222 = vpop.f32.mrb[0].mxu0
      %v2223 = vadd.f32 0.0, %v2222
      %v2224 = vpop.f32.mrb[0].mxu0
      %2225 = vdwg.mxu0
      %2226 = vmatprep.subr.mxu0 0.0
      %2227 = vmatpush1.msra.mxu0 %v1927
      %2228 = vmatprep.subr.mxu0 0.0
      %2229 = vmatpush1.msra.mxu0 %v1928
      %2230 = vmatprep.subr.mxu0 0.0
      %2231 = vmatpush1.msra.mxu0 %v1929
      %2232 = vmatprep.subr.mxu0 0.0
      %2233 = vmatpush1.msra.mxu0 %v1930
      %2234 = vmatprep.subr.mxu0 0.0
      %2235 = vmatpush1.msra.mxu0 %v1931
      %2236 = vmatprep.subr.mxu0 0.0
      %2237 = vmatpush1.msra.mxu0 %v1932
      %2238 = vmatprep.subr.mxu0 0.0
      %2239 = vmatpush1.msra.mxu0 %v1933
      %2240 = vmatprep.subr.mxu0 0.0
      %2241 = vmatpush1.msra.mxu0 %v1934
      %2242 = vmatprep.subr.mxu0 0.0
      %2243 = vmatpush1.msra.mxu0 %v1935
      %2244 = vmatprep.subr.mxu0 0.0
      %2245 = vmatpush1.msra.mxu0 %v1936
      %2246 = vmatprep.subr.mxu0 0.0
      %2247 = vmatpush1.msra.mxu0 %v1937
      %2248 = vmatprep.subr.mxu0 0.0
      %2249 = vmatpush1.msra.mxu0 %v1938
      %2250 = vmatprep.subr.mxu0 0.0
      %2251 = vmatpush1.msra.mxu0 %v1939
      %2252 = vmatprep.subr.mxu0 0.0
      %2253 = vmatpush1.msra.mxu0 %v1940
      %2254 = vmatprep.subr.mxu0 0.0
      %2255 = vmatpush1.msra.mxu0 %v1941
      %2256 = vmatprep.subr.mxu0 0.0
      %2257 = vmatpush1.msra.mxu0 %v1942
      %2258 = vmatprep.subr.mxu0 0.0
      %2259 = vmatpush1.msra.mxu0 %v1943
      %2260 = vmatprep.subr.mxu0 0.0
      %2261 = vmatpush1.msra.mxu0 %v1944
      %2262 = vmatprep.subr.mxu0 0.0
      %2263 = vmatpush1.msra.mxu0 %v1945
      %2264 = vmatprep.subr.mxu0 0.0
      %2265 = vmatpush1.msra.mxu0 %v1946
      %2266 = vmatprep.subr.mxu0 0.0
      %2267 = vmatpush1.msra.mxu0 %v1947
      %2268 = vmatprep.subr.mxu0 0.0
      %2269 = vmatpush1.msra.mxu0 %v1948
      %2270 = vmatprep.subr.mxu0 0.0
      %2271 = vmatpush1.msra.mxu0 %v1949
      %2272 = vmatprep.subr.mxu0 0.0
      %2273 = vmatpush1.msra.mxu0 %v1950
      %2274 = vmatprep.subr.mxu0 0.0
      %2275 = vmatpush1.msra.mxu0 %v1951
      %2276 = vmatprep.subr.mxu0 0.0
      %2277 = vmatpush1.msra.mxu0 %v1952
      %2278 = vmatprep.subr.mxu0 0.0
      %2279 = vmatpush1.msra.mxu0 %v1953
      %2280 = vmatprep.subr.mxu0 0.0
      %2281 = vmatpush1.msra.mxu0 %v1954
      %2282 = vmatprep.subr.mxu0 0.0
      %2283 = vmatpush1.msra.mxu0 %v1955
      %2284 = vmatprep.subr.mxu0 0.0
      %2285 = vmatpush1.msra.mxu0 %v1956
      %2286 = vmatprep.subr.mxu0 0.0
      %2287 = vmatpush1.msra.mxu0 %v1957
      %2288 = vmatprep.subr.mxu0 0.0
      %2289 = vmatpush1.msra.mxu0 %v1958
      %2290 = vmatprep.mubr.f32.mxu0 %v1866
      %2291 = vmatmul.mubr.f32.gmra.mrb[0].mxu0 %v1865
      %v2292 = vpop.f32.mrb[0].mxu0
      %v2293 = vadd.f32 %v2218, %v2292
      %v2294 = vpop.f32.mrb[0].mxu0
      %2295 = vmatprep.mubr.f32.mxu0 %v1882
      %2296 = vmatmul.mubr.f32.gmra.mrb[0].mxu0 %v1881
      %v2297 = vpop.f32.mrb[0].mxu0
      %v2298 = vadd.f32 %v2223, %v2297
      %v2299 = vpop.f32.mrb[0].mxu0
      %2300 = vdwg.mxu0
      %2301 = vmatprep.subr.mxu0 0.0
      %2302 = vmatpush1.msra.mxu0 %v1959
      %2303 = vmatprep.subr.mxu0 0.0
      %2304 = vmatpush1.msra.mxu0 %v1960
      %2305 = vmatprep.subr.mxu0 0.0
      %2306 = vmatpush1.msra.mxu0 %v1961
      %2307 = vmatprep.subr.mxu0 0.0
      %2308 = vmatpush1.msra.mxu0 %v1962
      %2309 = vmatprep.subr.mxu0 0.0
      %2310 = vmatpush1.msra.mxu0 %v1963
      %2311 = vmatprep.subr.mxu0 0.0
      %2312 = vmatpush1.msra.mxu0 %v1964
      %2313 = vmatprep.subr.mxu0 0.0
      %2314 = vmatpush1.msra.mxu0 %v1965
      %2315 = vmatprep.subr.mxu0 0.0
      %2316 = vmatpush1.msra.mxu0 %v1966
      %2317 = vmatprep.subr.mxu0 0.0
      %2318 = vmatpush1.msra.mxu0 %v1967
      %2319 = vmatprep.subr.mxu0 0.0
      %2320 = vmatpush1.msra.mxu0 %v1968
      %2321 = vmatprep.subr.mxu0 0.0
      %2322 = vmatpush1.msra.mxu0 %v1969
      %2323 = vmatprep.subr.mxu0 0.0
      %2324 = vmatpush1.msra.mxu0 %v1970
      %2325 = vmatprep.subr.mxu0 0.0
      %2326 = vmatpush1.msra.mxu0 %v1971
      %2327 = vmatprep.subr.mxu0 0.0
      %2328 = vmatpush1.msra.mxu0 %v1972
      %2329 = vmatprep.subr.mxu0 0.0
      %2330 = vmatpush1.msra.mxu0 %v1973
      %2331 = vmatprep.subr.mxu0 0.0
      %2332 = vmatpush1.msra.mxu0 %v1974
      %2333 = vmatprep.subr.mxu0 0.0
      %2334 = vmatpush1.msra.mxu0 %v1975
      %2335 = vmatprep.subr.mxu0 0.0
      %2336 = vmatpush1.msra.mxu0 %v1976
      %2337 = vmatprep.subr.mxu0 0.0
      %2338 = vmatpush1.msra.mxu0 %v1977
      %2339 = vmatprep.subr.mxu0 0.0
      %2340 = vmatpush1.msra.mxu0 %v1978
      %2341 = vmatprep.subr.mxu0 0.0
      %2342 = vmatpush1.msra.mxu0 %v1979
      %2343 = vmatprep.subr.mxu0 0.0
      %2344 = vmatpush1.msra.mxu0 %v1980
      %2345 = vmatprep.subr.mxu0 0.0
      %2346 = vmatpush1.msra.mxu0 %v1981
      %2347 = vmatprep.subr.mxu0 0.0
      %2348 = vmatpush1.msra.mxu0 %v1982
      %2349 = vmatprep.subr.mxu0 0.0
      %2350 = vmatpush1.msra.mxu0 %v1983
      %2351 = vmatprep.subr.mxu0 0.0
      %2352 = vmatpush1.msra.mxu0 %v1984
      %2353 = vmatprep.subr.mxu0 0.0
      %2354 = vmatpush1.msra.mxu0 %v1985
      %2355 = vmatprep.subr.mxu0 0.0
      %2356 = vmatpush1.msra.mxu0 %v1986
      %2357 = vmatprep.subr.mxu0 0.0
      %2358 = vmatpush1.msra.mxu0 %v1987
      %2359 = vmatprep.subr.mxu0 0.0
      %2360 = vmatpush1.msra.mxu0 %v1988
      %2361 = vmatprep.subr.mxu0 0.0
      %2362 = vmatpush1.msra.mxu0 %v1989
      %2363 = vmatprep.subr.mxu0 0.0
      %2364 = vmatpush1.msra.mxu0 %v1990
      %2365 = vmatprep.mubr.f32.mxu0 %v1868
      %2366 = vmatmul.mubr.f32.gmra.mrb[0].mxu0 %v1867
      %v2367 = vpop.f32.mrb[0].mxu0
      %v2368 = vadd.f32 %v2293, %v2367
      %v2369 = vpop.f32.mrb[0].mxu0
      %2370 = vmatprep.mubr.f32.mxu0 %v1884
      %2371 = vmatmul.mubr.f32.gmra.mrb[0].mxu0 %v1883
      %v2372 = vpop.f32.mrb[0].mxu0
      %v2373 = vadd.f32 %v2298, %v2372
      %v2374 = vpop.f32.mrb[0].mxu0
      %2375 = vdwg.mxu0
      %2376 = vmatprep.subr.mxu0 0.0
      %2377 = vmatpush1.msra.mxu0 %v1991
      %2378 = vmatprep.subr.mxu0 0.0
      %2379 = vmatpush1.msra.mxu0 %v1992
      %2380 = vmatprep.subr.mxu0 0.0
      %2381 = vmatpush1.msra.mxu0 %v1993
      %2382 = vmatprep.subr.mxu0 0.0
      %2383 = vmatpush1.msra.mxu0 %v1994
      %2384 = vmatprep.subr.mxu0 0.0
      %2385 = vmatpush1.msra.mxu0 %v1995
      %2386 = vmatprep.subr.mxu0 0.0
      %2387 = vmatpush1.msra.mxu0 %v1996
      %2388 = vmatprep.subr.mxu0 0.0
      %2389 = vmatpush1.msra.mxu0 %v1997
      %2390 = vmatprep.subr.mxu0 0.0
      %2391 = vmatpush1.msra.mxu0 %v1998
      %2392 = vmatprep.subr.mxu0 0.0
      %2393 = vmatpush1.msra.mxu0 %v1999
      %2394 = vmatprep.subr.mxu0 0.0
      %2395 = vmatpush1.msra.mxu0 %v2000
      %2396 = vmatprep.subr.mxu0 0.0
      %2397 = vmatpush1.msra.mxu0 %v2001
      %2398 = vmatprep.subr.mxu0 0.0
      %2399 = vmatpush1.msra.mxu0 %v2002
      %2400 = vmatprep.subr.mxu0 0.0
      %2401 = vmatpush1.msra.mxu0 %v2003
      %2402 = vmatprep.subr.mxu0 0.0
      %2403 = vmatpush1.msra.mxu0 %v2004
      %2404 = vmatprep.subr.mxu0 0.0
      %2405 = vmatpush1.msra.mxu0 %v2005
      %2406 = vmatprep.subr.mxu0 0.0
      %2407 = vmatpush1.msra.mxu0 %v2006
      %2408 = vmatprep.subr.mxu0 0.0
      %2409 = vmatpush1.msra.mxu0 %v2007
      %2410 = vmatprep.subr.mxu0 0.0
      %2411 = vmatpush1.msra.mxu0 %v2008
      %2412 = vmatprep.subr.mxu0 0.0
      %2413 = vmatpush1.msra.mxu0 %v2009
      %2414 = vmatprep.subr.mxu0 0.0
      %2415 = vmatpush1.msra.mxu0 %v2010
      %2416 = vmatprep.subr.mxu0 0.0
      %2417 = vmatpush1.msra.mxu0 %v2011
      %2418 = vmatprep.subr.mxu0 0.0
      %2419 = vmatpush1.msra.mxu0 %v2012
      %2420 = vmatprep.subr.mxu0 0.0
      %2421 = vmatpush1.msra.mxu0 %v2013
      %2422 = vmatprep.subr.mxu0 0.0
      %2423 = vmatpush1.msra.mxu0 %v2014
      %2424 = vmatprep.subr.mxu0 0.0
      %2425 = vmatpush1.msra.mxu0 %v2015
      %2426 = vmatprep.subr.mxu0 0.0
      %2427 = vmatpush1.msra.mxu0 %v2016
      %2428 = vmatprep.subr.mxu0 0.0
      %2429 = vmatpush1.msra.mxu0 %v2017
      %2430 = vmatprep.subr.mxu0 0.0
      %2431 = vmatpush1.msra.mxu0 %v2018
      %2432 = vmatprep.subr.mxu0 0.0
      %2433 = vmatpush1.msra.mxu0 %v2019
      %2434 = vmatprep.subr.mxu0 0.0
      %2435 = vmatpush1.msra.mxu0 %v2020
      %2436 = vmatprep.subr.mxu0 0.0
      %2437 = vmatpush1.msra.mxu0 %v2021
      %2438 = vmatprep.subr.mxu0 0.0
      %2439 = vmatpush1.msra.mxu0 %v2022
      %2440 = vmatprep.mubr.f32.mxu0 %v1870
      %2441 = vmatmul.mubr.f32.gmra.mrb[0].mxu0 %v1869
      %v2442 = vpop.f32.mrb[0].mxu0
      %v2443 = vadd.f32 %v2368, %v2442
      %v2444 = vpop.f32.mrb[0].mxu0
      %2445 = vmatprep.mubr.f32.mxu0 %v1886
      %2446 = vmatmul.mubr.f32.gmra.mrb[0].mxu0 %v1885
      %v2447 = vpop.f32.mrb[0].mxu0
      %v2448 = vadd.f32 %v2373, %v2447
      %v2449 = vpop.f32.mrb[0].mxu0
      %2450 = vdwg.mxu0
      %2451 = vmatprep.subr.mxu0 0.0
      %2452 = vmatpush1.msra.mxu0 %v2023
      %2453 = vmatprep.subr.mxu0 0.0
      %2454 = vmatpush1.msra.mxu0 %v2024
      %2455 = vmatprep.subr.mxu0 0.0
      %2456 = vmatpush1.msra.mxu0 %v2025
      %2457 = vmatprep.subr.mxu0 0.0
      %2458 = vmatpush1.msra.mxu0 %v2026
      %2459 = vmatprep.subr.mxu0 0.0
      %2460 = vmatpush1.msra.mxu0 %v2027
      %2461 = vmatprep.subr.mxu0 0.0
      %2462 = vmatpush1.msra.mxu0 %v2028
      %2463 = vmatprep.subr.mxu0 0.0
      %2464 = vmatpush1.msra.mxu0 %v2029
      %2465 = vmatprep.subr.mxu0 0.0
      %2466 = vmatpush1.msra.mxu0 %v2030
      %2467 = vmatprep.subr.mxu0 0.0
      %2468 = vmatpush1.msra.mxu0 %v2031
      %2469 = vmatprep.subr.mxu0 0.0
      %2470 = vmatpush1.msra.mxu0 %v2032
      %2471 = vmatprep.subr.mxu0 0.0
      %2472 = vmatpush1.msra.mxu0 %v2033
      %2473 = vmatprep.subr.mxu0 0.0
      %2474 = vmatpush1.msra.mxu0 %v2034
      %2475 = vmatprep.subr.mxu0 0.0
      %2476 = vmatpush1.msra.mxu0 %v2035
      %2477 = vmatprep.subr.mxu0 0.0
      %2478 = vmatpush1.msra.mxu0 %v2036
      %2479 = vmatprep.subr.mxu0 0.0
      %2480 = vmatpush1.msra.mxu0 %v2037
      %2481 = vmatprep.subr.mxu0 0.0
      %2482 = vmatpush1.msra.mxu0 %v2038
      %2483 = vmatprep.subr.mxu0 0.0
      %2484 = vmatpush1.msra.mxu0 %v2039
      %2485 = vmatprep.subr.mxu0 0.0
      %2486 = vmatpush1.msra.mxu0 %v2040
      %2487 = vmatprep.subr.mxu0 0.0
      %2488 = vmatpush1.msra.mxu0 %v2041
      %2489 = vmatprep.subr.mxu0 0.0
      %2490 = vmatpush1.msra.mxu0 %v2042
      %2491 = vmatprep.subr.mxu0 0.0
      %2492 = vmatpush1.msra.mxu0 %v2043
      %2493 = vmatprep.subr.mxu0 0.0
      %2494 = vmatpush1.msra.mxu0 %v2044
      %2495 = vmatprep.subr.mxu0 0.0
      %2496 = vmatpush1.msra.mxu0 %v2045
      %2497 = vmatprep.subr.mxu0 0.0
      %2498 = vmatpush1.msra.mxu0 %v2046
      %2499 = vmatprep.subr.mxu0 0.0
      %2500 = vmatpush1.msra.mxu0 %v2047
      %2501 = vmatprep.subr.mxu0 0.0
      %2502 = vmatpush1.msra.mxu0 %v2048
      %2503 = vmatprep.subr.mxu0 0.0
      %2504 = vmatpush1.msra.mxu0 %v2049
      %2505 = vmatprep.subr.mxu0 0.0
      %2506 = vmatpush1.msra.mxu0 %v2050
      %2507 = vmatprep.subr.mxu0 0.0
      %2508 = vmatpush1.msra.mxu0 %v2051
      %2509 = vmatprep.subr.mxu0 0.0
      %2510 = vmatpush1.msra.mxu0 %v2052
      %2511 = vmatprep.subr.mxu0 0.0
      %2512 = vmatpush1.msra.mxu0 %v2053
      %2513 = vmatprep.subr.mxu0 0.0
      %2514 = vmatpush1.msra.mxu0 %v2054
      %2515 = vmatprep.mubr.f32.mxu0 %v1872
      %2516 = vmatmul.mubr.f32.gmra.mrb[0].mxu0 %v1871
      %v2517 = vpop.f32.mrb[0].mxu0
      %v2518 = vadd.f32 %v2443, %v2517
      %v2519 = vpop.f32.mrb[0].mxu0
      %2520 = vmatprep.mubr.f32.mxu0 %v1888
      %2521 = vmatmul.mubr.f32.gmra.mrb[0].mxu0 %v1887
      %v2522 = vpop.f32.mrb[0].mxu0
      %v2523 = vadd.f32 %v2448, %v2522
      %v2524 = vpop.f32.mrb[0].mxu0
      %2525 = vdwg.mxu0
      %2526 = vmatprep.subr.mxu0 0.0
      %2527 = vmatpush1.msra.mxu0 %v2055
      %2528 = vmatprep.subr.mxu0 0.0
      %2529 = vmatpush1.msra.mxu0 %v2056
      %2530 = vmatprep.subr.mxu0 0.0
      %2531 = vmatpush1.msra.mxu0 %v2057
      %2532 = vmatprep.subr.mxu0 0.0
      %2533 = vmatpush1.msra.mxu0 %v2058
      %2534 = vmatprep.subr.mxu0 0.0
      %2535 = vmatpush1.msra.mxu0 %v2059
      %2536 = vmatprep.subr.mxu0 0.0
      %2537 = vmatpush1.msra.mxu0 %v2060
      %2538 = vmatprep.subr.mxu0 0.0
      %2539 = vmatpush1.msra.mxu0 %v2061
      %2540 = vmatprep.subr.mxu0 0.0
      %2541 = vmatpush1.msra.mxu0 %v2062
      %2542 = vmatprep.subr.mxu0 0.0
      %2543 = vmatpush1.msra.mxu0 %v2063
      %2544 = vmatprep.subr.mxu0 0.0
      %2545 = vmatpush1.msra.mxu0 %v2064
      %2546 = vmatprep.subr.mxu0 0.0
      %2547 = vmatpush1.msra.mxu0 %v2065
      %2548 = vmatprep.subr.mxu0 0.0
      %2549 = vmatpush1.msra.mxu0 %v2066
      %2550 = vmatprep.subr.mxu0 0.0
      %2551 = vmatpush1.msra.mxu0 %v2067
      %2552 = vmatprep.subr.mxu0 0.0
      %2553 = vmatpush1.msra.mxu0 %v2068
      %2554 = vmatprep.subr.mxu0 0.0
      %2555 = vmatpush1.msra.mxu0 %v2069
      %2556 = vmatprep.subr.mxu0 0.0
      %2557 = vmatpush1.msra.mxu0 %v2070
      %2558 = vmatprep.subr.mxu0 0.0
      %2559 = vmatpush1.msra.mxu0 %v2071
      %2560 = vmatprep.subr.mxu0 0.0
      %2561 = vmatpush1.msra.mxu0 %v2072
      %2562 = vmatprep.subr.mxu0 0.0
      %2563 = vmatpush1.msra.mxu0 %v2073
      %2564 = vmatprep.subr.mxu0 0.0
      %2565 = vmatpush1.msra.mxu0 %v2074
      %2566 = vmatprep.subr.mxu0 0.0
      %2567 = vmatpush1.msra.mxu0 %v2075
      %2568 = vmatprep.subr.mxu0 0.0
      %2569 = vmatpush1.msra.mxu0 %v2076
      %2570 = vmatprep.subr.mxu0 0.0
      %2571 = vmatpush1.msra.mxu0 %v2077
      %2572 = vmatprep.subr.mxu0 0.0
      %2573 = vmatpush1.msra.mxu0 %v2078
      %2574 = vmatprep.subr.mxu0 0.0
      %2575 = vmatpush1.msra.mxu0 %v2079
      %2576 = vmatprep.subr.mxu0 0.0
      %2577 = vmatpush1.msra.mxu0 %v2080
      %2578 = vmatprep.subr.mxu0 0.0
      %2579 = vmatpush1.msra.mxu0 %v2081
      %2580 = vmatprep.subr.mxu0 0.0
      %2581 = vmatpush1.msra.mxu0 %v2082
      %2582 = vmatprep.subr.mxu0 0.0
      %2583 = vmatpush1.msra.mxu0 %v2083
      %2584 = vmatprep.subr.mxu0 0.0
      %2585 = vmatpush1.msra.mxu0 %v2084
      %2586 = vmatprep.subr.mxu0 0.0
      %2587 = vmatpush1.msra.mxu0 %v2085
      %2588 = vmatprep.subr.mxu0 0.0
      %2589 = vmatpush1.msra.mxu0 %v2086
      %2590 = vmatprep.mubr.f32.mxu0 %v1874
      %2591 = vmatmul.mubr.f32.gmra.mrb[0].mxu0 %v1873
      %v2592 = vpop.f32.mrb[0].mxu0
      %v2593 = vadd.f32 %v2518, %v2592
      %v2594 = vpop.f32.mrb[0].mxu0
      %2595 = vmatprep.mubr.f32.mxu0 %v1890
      %2596 = vmatmul.mubr.f32.gmra.mrb[0].mxu0 %v1889
      %v2597 = vpop.f32.mrb[0].mxu0
      %v2598 = vadd.f32 %v2523, %v2597
      %v2599 = vpop.f32.mrb[0].mxu0
      %2600 = vdwg.mxu0
      %2601 = vmatprep.subr.mxu0 0.0
      %2602 = vmatpush1.msra.mxu0 %v2087
      %2603 = vmatprep.subr.mxu0 0.0
      %2604 = vmatpush1.msra.mxu0 %v2088
      %2605 = vmatprep.subr.mxu0 0.0
      %2606 = vmatpush1.msra.mxu0 %v2089
      %2607 = vmatprep.subr.mxu0 0.0
      %2608 = vmatpush1.msra.mxu0 %v2090
      %2609 = vmatprep.subr.mxu0 0.0
      %2610 = vmatpush1.msra.mxu0 %v2091
      %2611 = vmatprep.subr.mxu0 0.0
      %2612 = vmatpush1.msra.mxu0 %v2092
      %2613 = vmatprep.subr.mxu0 0.0
      %2614 = vmatpush1.msra.mxu0 %v2093
      %2615 = vmatprep.subr.mxu0 0.0
      %2616 = vmatpush1.msra.mxu0 %v2094
      %2617 = vmatprep.subr.mxu0 0.0
      %2618 = vmatpush1.msra.mxu0 %v2095
      %2619 = vmatprep.subr.mxu0 0.0
      %2620 = vmatpush1.msra.mxu0 %v2096
      %2621 = vmatprep.subr.mxu0 0.0
      %2622 = vmatpush1.msra.mxu0 %v2097
      %2623 = vmatprep.subr.mxu0 0.0
      %2624 = vmatpush1.msra.mxu0 %v2098
      %2625 = vmatprep.subr.mxu0 0.0
      %2626 = vmatpush1.msra.mxu0 %v2099
      %2627 = vmatprep.subr.mxu0 0.0
      %2628 = vmatpush1.msra.mxu0 %v2100
      %2629 = vmatprep.subr.mxu0 0.0
      %2630 = vmatpush1.msra.mxu0 %v2101
      %2631 = vmatprep.subr.mxu0 0.0
      %2632 = vmatpush1.msra.mxu0 %v2102
      %2633 = vmatprep.subr.mxu0 0.0
      %2634 = vmatpush1.msra.mxu0 %v2103
      %2635 = vmatprep.subr.mxu0 0.0
      %2636 = vmatpush1.msra.mxu0 %v2104
      %2637 = vmatprep.subr.mxu0 0.0
      %2638 = vmatpush1.msra.mxu0 %v2105
      %2639 = vmatprep.subr.mxu0 0.0
      %2640 = vmatpush1.msra.mxu0 %v2106
      %2641 = vmatprep.subr.mxu0 0.0
      %2642 = vmatpush1.msra.mxu0 %v2107
      %2643 = vmatprep.subr.mxu0 0.0
      %2644 = vmatpush1.msra.mxu0 %v2108
      %2645 = vmatprep.subr.mxu0 0.0
      %2646 = vmatpush1.msra.mxu0 %v2109
      %2647 = vmatprep.subr.mxu0 0.0
      %2648 = vmatpush1.msra.mxu0 %v2110
      %2649 = vmatprep.subr.mxu0 0.0
      %2650 = vmatpush1.msra.mxu0 %v2111
      %2651 = vmatprep.subr.mxu0 0.0
      %2652 = vmatpush1.msra.mxu0 %v2112
      %2653 = vmatprep.subr.mxu0 0.0
      %2654 = vmatpush1.msra.mxu0 %v2113
      %2655 = vmatprep.subr.mxu0 0.0
      %2656 = vmatpush1.msra.mxu0 %v2114
      %2657 = vmatprep.subr.mxu0 0.0
      %2658 = vmatpush1.msra.mxu0 %v2115
      %2659 = vmatprep.subr.mxu0 0.0
      %2660 = vmatpush1.msra.mxu0 %v2116
      %2661 = vmatprep.subr.mxu0 0.0
      %2662 = vmatpush1.msra.mxu0 %v2117
      %2663 = vmatprep.subr.mxu0 0.0
      %2664 = vmatpush1.msra.mxu0 %v2118
      %2665 = vmatprep.mubr.f32.mxu0 %v1876
      %2666 = vmatmul.mubr.f32.gmra.mrb[0].mxu0 %v1875
      %v2667 = vpop.f32.mrb[0].mxu0
      %v2668 = vadd.f32 %v2593, %v2667
      %v2669 = vpop.f32.mrb[0].mxu0
      %2670 = vmatprep.mubr.f32.mxu0 %v1892
      %2671 = vmatmul.mubr.f32.gmra.mrb[0].mxu0 %v1891
      %v2672 = vpop.f32.mrb[0].mxu0
      %v2673 = vadd.f32 %v2598, %v2672
      %v2674 = vpop.f32.mrb[0].mxu0
      %2675 = vdwg.mxu0
      %2676 = vmatprep.subr.mxu0 0.0
      %2677 = vmatpush1.msra.mxu0 %v2119
      %2678 = vmatprep.subr.mxu0 0.0
      %2679 = vmatpush1.msra.mxu0 %v2120
      %2680 = vmatprep.subr.mxu0 0.0
      %2681 = vmatpush1.msra.mxu0 %v2121
      %2682 = vmatprep.subr.mxu0 0.0
      %2683 = vmatpush1.msra.mxu0 %v2122
      %2684 = vmatprep.subr.mxu0 0.0
      %2685 = vmatpush1.msra.mxu0 %v2123
      %2686 = vmatprep.subr.mxu0 0.0
      %2687 = vmatpush1.msra.mxu0 %v2124
      %2688 = vmatprep.subr.mxu0 0.0
      %2689 = vmatpush1.msra.mxu0 %v2125
      %2690 = vmatprep.subr.mxu0 0.0
      %2691 = vmatpush1.msra.mxu0 %v2126
      %2692 = vmatprep.subr.mxu0 0.0
      %2693 = vmatpush1.msra.mxu0 %v2127
      %2694 = vmatprep.subr.mxu0 0.0
      %2695 = vmatpush1.msra.mxu0 %v2128
      %2696 = vmatprep.subr.mxu0 0.0
      %2697 = vmatpush1.msra.mxu0 %v2129
      %2698 = vmatprep.subr.mxu0 0.0
      %2699 = vmatpush1.msra.mxu0 %v2130
      %2700 = vmatprep.subr.mxu0 0.0
      %2701 = vmatpush1.msra.mxu0 %v2131
      %2702 = vmatprep.subr.mxu0 0.0
      %2703 = vmatpush1.msra.mxu0 %v2132
      %2704 = vmatprep.subr.mxu0 0.0
      %2705 = vmatpush1.msra.mxu0 %v2133
      %2706 = vmatprep.subr.mxu0 0.0
      %2707 = vmatpush1.msra.mxu0 %v2134
      %2708 = vmatprep.subr.mxu0 0.0
      %2709 = vmatpush1.msra.mxu0 %v2135
      %2710 = vmatprep.subr.mxu0 0.0
      %2711 = vmatpush1.msra.mxu0 %v2136
      %2712 = vmatprep.subr.mxu0 0.0
      %2713 = vmatpush1.msra.mxu0 %v2137
      %2714 = vmatprep.subr.mxu0 0.0
      %2715 = vmatpush1.msra.mxu0 %v2138
      %2716 = vmatprep.subr.mxu0 0.0
      %2717 = vmatpush1.msra.mxu0 %v2139
      %2718 = vmatprep.subr.mxu0 0.0
      %2719 = vmatpush1.msra.mxu0 %v2140
      %2720 = vmatprep.subr.mxu0 0.0
      %2721 = vmatpush1.msra.mxu0 %v2141
      %2722 = vmatprep.subr.mxu0 0.0
      %2723 = vmatpush1.msra.mxu0 %v2142
      %2724 = vmatprep.subr.mxu0 0.0
      %2725 = vmatpush1.msra.mxu0 %v2143
      %2726 = vmatprep.subr.mxu0 0.0
      %2727 = vmatpush1.msra.mxu0 %v2144
      %2728 = vmatprep.subr.mxu0 0.0
      %2729 = vmatpush1.msra.mxu0 %v2145
      %2730 = vmatprep.subr.mxu0 0.0
      %2731 = vmatpush1.msra.mxu0 %v2146
      %2732 = vmatprep.subr.mxu0 0.0
      %2733 = vmatpush1.msra.mxu0 %v2147
      %2734 = vmatprep.subr.mxu0 0.0
      %2735 = vmatpush1.msra.mxu0 %v2148
      %2736 = vmatprep.subr.mxu0 0.0
      %2737 = vmatpush1.msra.mxu0 %v2149
      %2738 = vmatprep.subr.mxu0 0.0
      %2739 = vmatpush1.msra.mxu0 %v2150
      %2740 = vmatprep.mubr.f32.mxu0 %v1878
      %2741 = vmatmul.mubr.f32.gmra.mrb[0].mxu0 %v1877
      %v2742 = vpop.f32.mrb[0].mxu0
      %v2743 = vadd.f32 %v2668, %v2742
      %v2744 = vpop.f32.mrb[0].mxu0
      %2745 = vmatprep.mubr.f32.mxu0 %v1894
      %2746 = vmatmul.mubr.f32.gmra.mrb[0].mxu0 %v1893
      %v2747 = vpop.f32.mrb[0].mxu0
      %v2748 = vadd.f32 %v2673, %v2747
      %v2749 = vpop.f32.mrb[0].mxu0
      %2750 = vdwg.mxu0
      %v2751 = vld [vmem:[%s3] sm:$0xff]
      %2753 = vset.pattern.permute.xlu0 16
      %2754 = vperm.xlu0 %2753, %v2751
      %v2755 = vpop.permute.xlu0 %2754
      %vm2757 = vcmask 130048
      %v2758 = vsel %vm2757, %v2751, 0
      %2760 = vmatprep.subr.mxu0 0.0
      %2761 = vmatpush1.msra.mxu0 %v2743
      %2762 = vmatprep.subr.mxu0 0.0
      %2763 = vmatpush1.msra.mxu0 %v2748
      %2764 = vmatprep.subr.mxu0 0.0
      %2765 = vmatpush1.msra.mxu0 0.0
      %2766 = vmatprep.subr.mxu0 0.0
      %2767 = vmatpush1.msra.mxu0 0.0
      %2768 = vmatprep.subr.mxu0 0.0
      %2769 = vmatpush1.msra.mxu0 0.0
      %2770 = vmatprep.subr.mxu0 0.0
      %2771 = vmatpush1.msra.mxu0 0.0
      %2772 = vmatprep.subr.mxu0 0.0
      %2773 = vmatpush1.msra.mxu0 0.0
      %2774 = vmatprep.subr.mxu0 0.0
      %2775 = vmatpush1.msra.mxu0 0.0
      %2776 = vmatprep.subr.mxu0 0.0
      %2777 = vmatpush1.msra.mxu0 0.0
      %2778 = vmatprep.subr.mxu0 0.0
      %2779 = vmatpush1.msra.mxu0 0.0
      %2780 = vmatprep.subr.mxu0 0.0
      %2781 = vmatpush1.msra.mxu0 0.0
      %2782 = vmatprep.subr.mxu0 0.0
      %2783 = vmatpush1.msra.mxu0 0.0
      %2784 = vmatprep.subr.mxu0 0.0
      %2785 = vmatpush1.msra.mxu0 0.0
      %2786 = vmatprep.subr.mxu0 0.0
      %2787 = vmatpush1.msra.mxu0 0.0
      %2788 = vmatprep.subr.mxu0 0.0
      %2789 = vmatpush1.msra.mxu0 0.0
      %2790 = vmatprep.subr.mxu0 0.0
      %2791 = vmatpush1.msra.mxu0 0.0
      %2792 = vmatprep.subr.mxu0 0.0
      %2793 = vmatpush1.msra.mxu0 0.0
      %2794 = vmatprep.subr.mxu0 0.0
      %2795 = vmatpush1.msra.mxu0 0.0
      %2796 = vmatprep.subr.mxu0 0.0
      %2797 = vmatpush1.msra.mxu0 0.0
      %2798 = vmatprep.subr.mxu0 0.0
      %2799 = vmatpush1.msra.mxu0 0.0
      %2800 = vmatprep.subr.mxu0 0.0
      %2801 = vmatpush1.msra.mxu0 0.0
      %2802 = vmatprep.subr.mxu0 0.0
      %2803 = vmatpush1.msra.mxu0 0.0
      %2804 = vmatprep.subr.mxu0 0.0
      %2805 = vmatpush1.msra.mxu0 0.0
      %2806 = vmatprep.subr.mxu0 0.0
      %2807 = vmatpush1.msra.mxu0 0.0
      %2808 = vmatprep.subr.mxu0 0.0
      %2809 = vmatpush1.msra.mxu0 0.0
      %2810 = vmatprep.subr.mxu0 0.0
      %2811 = vmatpush1.msra.mxu0 0.0
      %2812 = vmatprep.subr.mxu0 0.0
      %2813 = vmatpush1.msra.mxu0 0.0
      %2814 = vmatprep.subr.mxu0 0.0
      %2815 = vmatpush1.msra.mxu0 0.0
      %2816 = vmatprep.subr.mxu0 0.0
      %2817 = vmatpush1.msra.mxu0 0.0
      %2818 = vmatprep.subr.mxu0 0.0
      %2819 = vmatpush1.msra.mxu0 0.0
      %2820 = vmatprep.subr.mxu0 0.0
      %2821 = vmatpush1.msra.mxu0 0.0
      %2822 = vmatprep.subr.mxu0 0.0
      %2823 = vmatpush1.msra.mxu0 0.0
      %2824 = vmatprep.mubr.f32.mxu0 0.0
      %2825 = vmatmul.mubr.f32.gmra.mrb[0].mxu0 %v2758
      %v2826 = vpop.f32.mrb[0].mxu0
      %v2827 = vadd.f32 %v2755, %v2826
      %v2828 = vpop.f32.mrb[0].mxu0
      %2829 = vdwg.mxu0
      %2830 = vst [vmem:[%s224] sm:$0xff] %v2827
      %p2831 = scmp.lt.s32.totalorder %s16, 1
      %s2832 = scalar_select %p2831, %s16, 1
      %s2833 = smul.addr %s2832, 8
      %s2834 = scalar_lea.vmem %s5, %s2833
      // Predicated region
      $region41: #{fwd.1} parent=39 // pred_check
        %p2835 = pneg %p144
      $region42: #{fwd.1} parent=39 // pred_check_branch
        %2837 = sbr.rel (%p2835) target = $region44
      $region43: #{fwd.1} parent=39 // pred_region
        _
      $region44: #{fwd.1} parent=39 // pred_fallthru
        _
    $region40: #{fwd.1} parent=5 // pred_fallthru
      _
    %p2838 = scmp.le.s32.totalorder 2, %s11
    // Predicated region
    $region45: #{fwd.1} parent=5 // pred_check
      %p2839 = pneg %p2838
    $region46: #{fwd.1} parent=5 // pred_check_branch
      %2841 = sbr.rel (%p2839) target = $region48
    $region47: #{fwd.1} parent=5 // pred_region
      %s2842 = ssub.s32 %s11, 2
      // Predicated region
      $region49: #{fwd.1} parent=47 // pred_check
        %p2843 = pneg %p150
      $region50: #{fwd.1} parent=47 // pred_check_branch
        %2845 = sbr.rel (%p2843) target = $region52
      $region51: #{fwd.1} parent=47 // pred_region
        %p2846 = scmp.lt.s32.totalorder %s17, 1
        %s2847 = scalar_select %p2846, %s17, 1
        %s2848 = smul.addr %s2847, 8
        %s2849 = scalar_lea.vmem %s5, %s2848
      $region52: #{fwd.1} parent=47 // pred_fallthru
        _
    $region48: #{fwd.1} parent=5 // pred_fallthru
      _
  $region6: #{fwd.1} parent=0 // loop_footer
    %s15 = sadd.s32 1, %s11
  $region7: #{fwd.1} parent=0 // loop_footer_branch
    %10 = sbr.rel target = $region3
  $region8: #{fwd.1} parent=0 // loop_exit
    _

</llo_original>
